<compile_context>
chip_gen: v5e
topology: v5e:2x2
jax: 0.10.0
libtpu: 0.0.40
codegen_flags: <defaults>
</compile_context>

<pallas_src>
import functools
import math

import jax
import jax.numpy as jnp
from jax.experimental import pallas as pl
from jax.experimental.pallas import tpu as pltpu


# ----------------------------------------------------------------------------
# helpers: tile pickers + generation-aware VMEM limit
# ----------------------------------------------------------------------------

def _round_up(x, m):
    return ((x + m - 1) // m) * m


def _largest_divisor_tile(dim, target, align):
    """Largest tile <= target that exactly divides `dim` (align-multiple), else dim.

    Only used for the matmul reduction (K) axis, where a padded ragged block
    would corrupt the accumulation; the M/N axes use cdiv grids instead.
    """
    if dim <= target:
        return dim
    t = (target // align) * align
    for cand in range(t, align - 1, -align):
        if dim % cand == 0:
            return cand
    return dim


@functools.lru_cache(maxsize=None)
def _vmem_capacity_bytes():
    """Per-TensorCore VMEM capacity (v5e/v6e: 128 MiB, v7x: 64 MiB)."""
    try:
        info = pltpu.get_tpu_info()
        for name in ("vmem_capacity_bytes", "vmem_size_bytes", "vmem_bytes"):
            v = getattr(info, name, None)
            if v:
                return int(v)
    except Exception:
        pass
    return 64 * 2**20  # conservative fallback (v7x per-TC)


def _vmem_limit(bytes_needed):
    """Generation-aware scoped-VMEM limit (defaults are only 16-32 MiB)."""
    cap = int(_vmem_capacity_bytes() * 0.80)          # headroom for Mosaic internals
    want = max(int(bytes_needed * 1.5), 32 * 2**20)
    return int(max(min(want, cap), 16 * 2**20))


# ----------------------------------------------------------------------------
# tiled matmul kernel with fused LayerNorm prologue and
# bias / tanh-GELU / residual-add epilogue
# ----------------------------------------------------------------------------

_GELU_C = 0.7978845608028654  # sqrt(2/pi)


def _make_matmul_kernel(has_ln, has_bias, has_resid, activation):
    def kernel(*refs):
        it = iter(refs)
        x_ref = next(it)
        w_ref = next(it)
        scale_ref = next(it) if has_ln else None
        shift_ref = next(it) if has_ln else None
        b_ref = next(it) if has_bias else None
        r_ref = next(it) if has_resid else None
        o_ref = next(it)
        acc_ref = next(it)

        @pl.when(pl.program_id(2) == 0)
        def _init():
            acc_ref[...] = jnp.zeros_like(acc_ref)

        x = x_ref[...]
        if has_ln:
            # two-pass LayerNorm over the (full) feature dim of the row tile
            xf = x.astype(jnp.float32)
            inv_d = 1.0 / xf.shape[-1]
            mean = jnp.sum(xf, axis=-1, keepdims=True) * inv_d
            xc = xf - mean
            var = jnp.sum(xc * xc, axis=-1, keepdims=True) * inv_d
            xn = xc * jax.lax.rsqrt(var + 1e-5)
            xn = (scale_ref[...].astype(jnp.float32) * xn
                  + shift_ref[...].astype(jnp.float32))
            x = xn.astype(x_ref.dtype)          # back to native dtype for the MXU

        # native-dtype MXU operands, f32 accumulation
        acc_ref[...] += jnp.dot(x, w_ref[...], preferred_element_type=jnp.float32)

        @pl.when(pl.program_id(2) == pl.num_programs(2) - 1)
        def _finish():
            out = acc_ref[...]
            if has_bias:
                out = out + b_ref[...].astype(jnp.float32)
            if activation == "gelu":
                out = 0.5 * out * (1.0 + jnp.tanh(
                    _GELU_C * (out + 0.044715 * out * out * out)))
            if has_resid:
                out = out + r_ref[...].astype(jnp.float32)
            o_ref[...] = out.astype(o_ref.dtype)

    return kernel


def linear(x, w, b=None, *, activation=None, ln=None, residual=None,
           tm=512, tn=1024, tk=512):
    """y = act(LN?(x) @ w + b) + residual?.

    x: (M, K), w: (K, N), b: (N,) or None, residual: (M, N) or None,
    ln: (scale(K,), shift(K,)) or None -> LayerNorm applied to x rows in the
    matmul prologue (K is kept untiled in that case).
    """
    m, k = x.shape
    k2, n = w.shape
    assert k == k2
    if ln is not None:
        tk_eff = k                                   # full rows for exact mean/var
    else:
        tk_eff = _largest_divisor_tile(k, tk, 128)
    tm_eff = min(tm, _round_up(m, 8))
    tn_eff = min(tn, _round_up(n, 128))
    grid = (pl.cdiv(m, tm_eff), pl.cdiv(n, tn_eff), k // tk_eff)

    in_specs = [pl.BlockSpec((tm_eff, tk_eff), lambda i, j, kk: (i, kk)),
                pl.BlockSpec((tk_eff, tn_eff), lambda i, j, kk: (kk, j))]
    args = [x, w]
    if ln is not None:
        scale, shift = ln
        in_specs += [pl.BlockSpec((1, k), lambda i, j, kk: (0, 0)),
                     pl.BlockSpec((1, k), lambda i, j, kk: (0, 0))]
        args += [scale.reshape(1, k), shift.reshape(1, k)]
    if b is not None:
        in_specs.append(pl.BlockSpec((1, tn_eff), lambda i, j, kk: (0, j)))
        args.append(b.reshape(1, n))
    if residual is not None:
        in_specs.append(pl.BlockSpec((tm_eff, tn_eff), lambda i, j, kk: (i, j)))
        args.append(residual)

    isz = x.dtype.itemsize
    wsz = w.dtype.itemsize
    vmem_needed = (2 * tm_eff * tk_eff * isz + 2 * tk_eff * tn_eff * wsz
                   + 2 * tm_eff * tn_eff * isz + tm_eff * tn_eff * 4
                   + (2 * tn_eff * 4 if b is not None else 0)
                   + (2 * tm_eff * tn_eff * isz if residual is not None else 0)
                   + (4 * k * 4 if ln is not None else 0))

    out = pl.pallas_call(
        _make_matmul_kernel(ln is not None, b is not None, residual is not None,
                            activation),
        out_shape=jax.ShapeDtypeStruct((m, n), x.dtype),
        grid_spec=pltpu.PrefetchScalarGridSpec(
            num_scalar_prefetch=0,
            grid=grid,
            in_specs=in_specs,
            out_specs=pl.BlockSpec((tm_eff, tn_eff), lambda i, j, kk: (i, j)),
            scratch_shapes=[pltpu.VMEM((tm_eff, tn_eff), jnp.float32)]),
        compiler_params=pltpu.CompilerParams(
            dimension_semantics=("parallel", "parallel", "arbitrary"),
            vmem_limit_bytes=_vmem_limit(vmem_needed)),
    )(*args)
    return out


# ----------------------------------------------------------------------------
# causal self-attention kernel: consumes fused QKV (B,S,3E), emits ctx (B,S,E)
# ----------------------------------------------------------------------------

def _attn_kernel(qkv_ref, o_ref, *, n_heads, head_dim, scale):
    seq = qkv_ref.shape[1]
    e = n_heads * head_dim
    row = jax.lax.broadcasted_iota(jnp.int32, (seq, seq), 0)
    col = jax.lax.broadcasted_iota(jnp.int32, (seq, seq), 1)
    causal = row >= col
    # TODO(synk): for long contexts this should be a KV-tiled flash-style kernel
    # (online softmax + causal tile skipping); full-sequence (S,S) scores are
    # fine at the demo context length but will not fit v7x VMEM at S >~ 2k.
    ctxs = []
    for h in range(n_heads):
        lo = h * head_dim
        q = qkv_ref[0, :, lo:lo + head_dim] * scale      # fold 1/sqrt(dh) into q
        k = qkv_ref[0, :, e + lo:e + lo + head_dim]
        v = qkv_ref[0, :, 2 * e + lo:2 * e + lo + head_dim]
        s = jax.lax.dot_general(q, k, (((1,), (1,)), ((), ())),
                                preferred_element_type=jnp.float32)
        s = jnp.where(causal, s, -1e30)
        m = jnp.max(s, axis=-1, keepdims=True)
        p = jnp.exp(s - m)
        denom = jnp.sum(p, axis=-1, keepdims=True)
        ctx = jnp.dot(p.astype(qkv_ref.dtype), v, preferred_element_type=jnp.float32)
        ctx = ctx * pl.reciprocal(denom, approx=True)    # EUP slot, not VALU divide
        ctxs.append(ctx.astype(o_ref.dtype))
    # single lane-dense store of the whole (S, E) block
    o_ref[0] = jnp.concatenate(ctxs, axis=-1)


def causal_attention(qkv, *, n_heads, head_dim):
    """qkv: (B, S, 3E) with columns [Q | K | V]; returns context (B, S, E)."""
    b, s, three_e = qkv.shape
    e = n_heads * head_dim
    in_spec = pl.BlockSpec((1, s, three_e), lambda i: (i, 0, 0))
    out_spec = pl.BlockSpec((1, s, e), lambda i: (i, 0, 0))
    isz = qkv.dtype.itemsize
    vmem_needed = (2 * s * three_e * isz + 2 * s * e * isz
                   + 6 * s * s * 4 + 4 * s * head_dim * 4)
    return pl.pallas_call(
        functools.partial(_attn_kernel, n_heads=n_heads, head_dim=head_dim,
                          scale=1.0 / math.sqrt(head_dim)),
        out_shape=jax.ShapeDtypeStruct((b, s, e), qkv.dtype),
        grid_spec=pltpu.PrefetchScalarGridSpec(
            num_scalar_prefetch=0,
            grid=(b,),
            in_specs=[in_spec],
            out_specs=out_spec),
        compiler_params=pltpu.CompilerParams(
            dimension_semantics=("parallel",),
            vmem_limit_bytes=_vmem_limit(vmem_needed)),
    )(qkv)


# ----------------------------------------------------------------------------
# GPT forward pass built from the kernels above
# ----------------------------------------------------------------------------

def gpt_forward(params, in_idx, *, n_heads):
    b, s = in_idx.shape
    e = params["tok_emb"].shape[1]
    dh = e // n_heads
    blocks = params["blocks"]

    # TODO(synk): embedding gather stays in XLA (jnp.take); XLA fuses the +pos add.
    # TODO(synk): dropout is identity in eval mode; no RNG kernel is emitted.
    resid = jnp.take(params["tok_emb"], in_idx, axis=0) + params["pos_emb"][:s][None]
    resid = resid.reshape(b * s, e)

    for blk in blocks:
        # QKV projection with the block's norm1 fused into its prologue.
        qkv = linear(resid, blk["w_qkv"],
                     ln=(blk["ln1_scale"], blk["ln1_shift"]))        # (rows, 3E)
        # Attention reads the fused QKV layout directly (no split/transpose).
        ctx = causal_attention(qkv.reshape(b, s, 3 * e),
                               n_heads=n_heads, head_dim=dh)         # (B, S, E)
        # Out-proj with the residual add fused into its epilogue.
        resid = linear(ctx.reshape(b * s, e), blk["w_o"], blk["b_o"],
                       residual=resid)
        # FF1 with norm2 fused prologue and GELU fused epilogue.
        h = linear(resid, blk["w_ff1"], blk["b_ff1"], activation="gelu",
                   ln=(blk["ln2_scale"], blk["ln2_shift"]))
        # FF2 with the residual add fused into its epilogue.
        resid = linear(h, blk["w_ff2"], blk["b_ff2"], residual=resid)

    # LM head with the final LayerNorm fused into its prologue.
    logits = linear(resid, params["w_head"],
                    ln=(params["final_scale"], params["final_shift"]))
    return logits.reshape(b, s, -1)


# ----------------------------------------------------------------------------
# pure-JAX reference (mirrors the PyTorch module math)
# ----------------------------------------------------------------------------

def _ln_ref(x, scale, shift):
    mean = x.mean(-1, keepdims=True)
    var = ((x - mean) ** 2).mean(-1, keepdims=True)
    return scale * (x - mean) / jnp.sqrt(var + 1e-5) + shift


def _gelu_ref(x):
    c = jnp.sqrt(2.0 / jnp.pi).astype(x.dtype)
    return 0.5 * x * (1 + jnp.tanh(c * (x + 0.044715 * x ** 3)))


def gpt_reference(params, in_idx, *, n_heads):
    hp = jax.lax.Precision.HIGHEST
    b, s = in_idx.shape
    e = params["tok_emb"].shape[1]
    dh = e // n_heads
    x = jnp.take(params["tok_emb"], in_idx, axis=0) + params["pos_emb"][:s][None]
    row = jnp.arange(s)[:, None]
    col = jnp.arange(s)[None, :]
    for blk in params["blocks"]:
        skip = x
        h = _ln_ref(x, blk["ln1_scale"], blk["ln1_shift"])
        qkv = jnp.dot(h, blk["w_qkv"], precision=hp)
        q, k, v = jnp.split(qkv, 3, axis=-1)
        heads = lambda t: t.reshape(b, s, n_heads, dh).transpose(0, 2, 1, 3)
        q, k, v = heads(q), heads(k), heads(v)
        sc = jnp.einsum("bhqd,bhkd->bhqk", q, k, precision=hp)
        sc = jnp.where(row >= col, sc, -1e30)
        w = jax.nn.softmax(sc / jnp.sqrt(jnp.float32(dh)), axis=-1)
        ctx = jnp.einsum("bhqk,bhkd->bhqd", w, v, precision=hp)
        ctx = ctx.transpose(0, 2, 1, 3).reshape(b, s, e)
        attn_out = jnp.dot(ctx, blk["w_o"], precision=hp) + blk["b_o"]
        x = attn_out + skip
        skip = x
        h = _ln_ref(x, blk["ln2_scale"], blk["ln2_shift"])
        h = _gelu_ref(jnp.dot(h, blk["w_ff1"], precision=hp) + blk["b_ff1"])
        h = jnp.dot(h, blk["w_ff2"], precision=hp) + blk["b_ff2"]
        x = h + skip
    x = _ln_ref(x, params["final_scale"], params["final_shift"])
    return jnp.dot(x, params["w_head"], precision=hp)


# ----------------------------------------------------------------------------
# deterministic parameter init + demo
# ----------------------------------------------------------------------------

def init_params(key, cfg):
    e, v, c = cfg["emb_dim"], cfg["vocab_size"], cfg["context_length"]
    n_layers = cfg["n_layers"]
    std = 0.02
    keys = iter(jax.random.split(key, 3 + 7 * n_layers))

    def w(shape):
        return (std * jax.random.normal(next(keys), shape)).astype(jnp.float32)

    params = {
        "tok_emb": w((v, e)),
        "pos_emb": w((c, e)),
        "final_scale": jnp.ones((e,), jnp.float32),
        "final_shift": jnp.zeros((e,), jnp.float32),
        "w_head": w((e, v)),
        "blocks": [],
    }
    for _ in range(n_layers):
        params["blocks"].append({
            "ln1_scale": jnp.ones((e,), jnp.float32),
            "ln1_shift": jnp.zeros((e,), jnp.float32),
            "ln2_scale": jnp.ones((e,), jnp.float32),
            "ln2_shift": jnp.zeros((e,), jnp.float32),
            "w_qkv": w((e, 3 * e)),
            "w_o": w((e, e)), "b_o": w((e,)),
            "w_ff1": w((e, 4 * e)), "b_ff1": w((4 * e,)),
            "w_ff2": w((4 * e, e)), "b_ff2": w((e,)),
        })
    return params


if __name__ == "__main__":
    cfg = dict(vocab_size=97, context_length=16, emb_dim=64,
               n_heads=2, n_layers=2, drop_rate=0.0, qvk_bias=False)
    batch, seq = 2, 8

    key = jax.random.PRNGKey(0)
    pkey, ikey = jax.random.split(key)
    params = init_params(pkey, cfg)
    in_idx = jax.random.randint(ikey, (batch, seq), 0, cfg["vocab_size"],
                                dtype=jnp.int32)

    fwd = jax.jit(functools.partial(gpt_forward, n_heads=cfg["n_heads"]))
    logits = fwd(params, in_idx)
    jax.block_until_ready(logits)

    ref = gpt_reference(params, in_idx, n_heads=cfg["n_heads"])
    assert logits.shape == (batch, seq, cfg["vocab_size"])
    max_err = float(jnp.max(jnp.abs(logits - ref)))
    assert jnp.allclose(logits, ref, atol=2e-3, rtol=2e-3), \
        f"mismatch vs reference (max abs err {max_err})"

    print("KERNEL_OK")
</pallas_src>

<mosaic_0001>
module attributes {stable_mosaic.version = 11 : i64} {
  func.func @kernel(%arg0: i32, %arg1: i32, %arg2: i32, %arg3: memref<16x64xf32, #tpu.memory_space<vmem>>, %arg4: memref<64x256xf32, #tpu.memory_space<vmem>>, %arg5: memref<1x64xf32, #tpu.memory_space<vmem>>, %arg6: memref<1x64xf32, #tpu.memory_space<vmem>>, %arg7: memref<16x256xf32, #tpu.memory_space<vmem>>, %arg8: memref<16x256xf32, #tpu.memory_space<vmem>>) attributes {dimension_semantics = [#tpu.dimension_semantics<parallel>, #tpu.dimension_semantics<parallel>, #tpu.dimension_semantics<arbitrary>], iteration_bounds = array<i64: 1, 1, 1>, scalar_prefetch = 0 : i64, scratch_operands = 1 : i64, tpu.core_type = #tpu.core_type<tc>, window_params = [{transform_indices = @transform_0, window_bounds = array<i64: 16, 64>}, {transform_indices = @transform_1, window_bounds = array<i64: 64, 256>}, {pipeline_mode = #tpu.pipeline_mode<synchronous>, transform_indices = @transform_2, window_bounds = array<i64: 1, 64>}, {pipeline_mode = #tpu.pipeline_mode<synchronous>, transform_indices = @transform_3, window_bounds = array<i64: 1, 64>}, {transform_indices = @transform_4, window_bounds = array<i64: 16, 256>}]} {
    %c0_i32 = arith.constant 0 : i32
    %0 = arith.cmpi eq, %arg2, %c0_i32 : i32
    %1 = arith.extui %0 : i1 to i32
    %c0_i32_0 = arith.constant 0 : i32
    %2 = arith.cmpi ne, %1, %c0_i32_0 : i32
    scf.if %2 {
      %cst_19 = arith.constant 0.000000e+00 : f32
      %34 = vector.broadcast %cst_19 : f32 to vector<16x256xf32>
      %c0_20 = arith.constant 0 : index
      %c0_21 = arith.constant 0 : index
      %35 = vector.load %arg8[%c0_20, %c0_21] : memref<16x256xf32, #tpu.memory_space<vmem>>, vector<16x256xf32>
      tpu.vector_store %arg8[%c0_20, %c0_21], %34 {strides = array<i32>} : memref<16x256xf32, #tpu.memory_space<vmem>>, vector<16x256xf32>,
    } else {
    }
    %c0 = arith.constant 0 : index
    %c0_1 = arith.constant 0 : index
    %3 = vector.load %arg3[%c0, %c0_1] : memref<16x64xf32, #tpu.memory_space<vmem>>, vector<16x64xf32>
    %cst = arith.constant dense<0.000000e+00> : vector<16xf32>
    %4 = vector.multi_reduction <add>, %3, %cst [1] : vector<16x64xf32> to vector<16xf32>
    %5 = vector.shape_cast %4 : vector<16xf32> to vector<16x1xf32>
    %cst_2 = arith.constant 1.562500e-02 : f32
    %6 = vector.broadcast %cst_2 : f32 to vector<16x1xf32>
    %7 = arith.mulf %5, %6 : vector<16x1xf32>
    %8 = vector.broadcast %7 : vector<16x1xf32> to vector<16x64xf32>
    %9 = arith.subf %3, %8 : vector<16x64xf32>
    %10 = arith.mulf %9, %9 : vector<16x64xf32>
    %cst_3 = arith.constant dense<0.000000e+00> : vector<16xf32>
    %11 = vector.multi_reduction <add>, %10, %cst_3 [1] : vector<16x64xf32> to vector<16xf32>
    %12 = vector.shape_cast %11 : vector<16xf32> to vector<16x1xf32>
    %cst_4 = arith.constant 1.562500e-02 : f32
    %13 = vector.broadcast %cst_4 : f32 to vector<16x1xf32>
    %14 = arith.mulf %12, %13 : vector<16x1xf32>
    %cst_5 = arith.constant 9.99999974E-6 : f32
    %15 = vector.broadcast %cst_5 : f32 to vector<16x1xf32>
    %16 = arith.addf %14, %15 : vector<16x1xf32>
    %17 = math.rsqrt %16 : vector<16x1xf32>
    %18 = vector.broadcast %17 : vector<16x1xf32> to vector<16x64xf32>
    %19 = arith.mulf %9, %18 : vector<16x64xf32>
    %c0_6 = arith.constant 0 : index
    %c0_7 = arith.constant 0 : index
    %20 = vector.load %arg5[%c0_6, %c0_7] : memref<1x64xf32, #tpu.memory_space<vmem>>, vector<1x64xf32>
    %21 = vector.broadcast %20 : vector<1x64xf32> to vector<16x64xf32>
    %22 = arith.mulf %21, %19 : vector<16x64xf32>
    %c0_8 = arith.constant 0 : index
    %c0_9 = arith.constant 0 : index
    %23 = vector.load %arg6[%c0_8, %c0_9] : memref<1x64xf32, #tpu.memory_space<vmem>>, vector<1x64xf32>
    %24 = vector.broadcast %23 : vector<1x64xf32> to vector<16x64xf32>
    %25 = arith.addf %22, %24 : vector<16x64xf32>
    %c0_10 = arith.constant 0 : index
    %c0_11 = arith.constant 0 : index
    %26 = vector.load %arg8[%c0_10, %c0_11] : memref<16x256xf32, #tpu.memory_space<vmem>>, vector<16x256xf32>
    %c0_12 = arith.constant 0 : index
    %c0_13 = arith.constant 0 : index
    %27 = vector.load %arg4[%c0_12, %c0_13] : memref<64x256xf32, #tpu.memory_space<vmem>>, vector<64x256xf32>
    %cst_14 = arith.constant dense<0.000000e+00> : vector<16x256xf32>
    %28 = tpu.matmul %25, %27, %cst_14 {dimension_numbers = #tpu.dot_dimension_numbers<[1], [0], [0], [1], [0, 0, 1, 1], [], []>} : vector<16x64xf32>, vector<64x256xf32>, vector<16x256xf32> -> vector<16x256xf32>
    %29 = arith.addf %26, %28 : vector<16x256xf32>
    %c0_15 = arith.constant 0 : index
    %c0_16 = arith.constant 0 : index
    %30 = vector.load %arg8[%c0_15, %c0_16] : memref<16x256xf32, #tpu.memory_space<vmem>>, vector<16x256xf32>
    tpu.vector_store %arg8[%c0_15, %c0_16], %29 {strides = array<i32>} : memref<16x256xf32, #tpu.memory_space<vmem>>, vector<16x256xf32>,
    %c0_i32_17 = arith.constant 0 : i32
    %31 = arith.cmpi eq, %arg2, %c0_i32_17 : i32
    %32 = arith.extui %31 : i1 to i32
    %c0_i32_18 = arith.constant 0 : i32
    %33 = arith.cmpi ne, %32, %c0_i32_18 : i32
    scf.if %33 {
      %c0_19 = arith.constant 0 : index
      %c0_20 = arith.constant 0 : index
      %34 = vector.load %arg8[%c0_19, %c0_20] : memref<16x256xf32, #tpu.memory_space<vmem>>, vector<16x256xf32>
      %c0_21 = arith.constant 0 : index
      %c0_22 = arith.constant 0 : index
      %35 = vector.load %arg7[%c0_21, %c0_22] : memref<16x256xf32, #tpu.memory_space<vmem>>, vector<16x256xf32>
      tpu.vector_store %arg7[%c0_21, %c0_22], %34 {strides = array<i32>} : memref<16x256xf32, #tpu.memory_space<vmem>>, vector<16x256xf32>,
    } else {
    }
    return
  }
  func.func @transform_0(%arg0: i32, %arg1: i32, %arg2: i32) -> (i32, i32) {
    %c0_i32 = arith.constant 0 : i32
    return %arg0, %arg2 : i32, i32
  }
  func.func @transform_1(%arg0: i32, %arg1: i32, %arg2: i32) -> (i32, i32) {
    %c0_i32 = arith.constant 0 : i32
    return %arg2, %arg1 : i32, i32
  }
  func.func @transform_2(%arg0: i32, %arg1: i32, %arg2: i32) -> (i32, i32) {
    %c0_i32 = arith.constant 0 : i32
    %c0_i32_0 = arith.constant 0 : i32
    %c0_i32_1 = arith.constant 0 : i32
    return %c0_i32, %c0_i32_0 : i32, i32
  }
  func.func @transform_3(%arg0: i32, %arg1: i32, %arg2: i32) -> (i32, i32) {
    %c0_i32 = arith.constant 0 : i32
    %c0_i32_0 = arith.constant 0 : i32
    %c0_i32_1 = arith.constant 0 : i32
    return %c0_i32, %c0_i32_0 : i32, i32
  }
  func.func @transform_4(%arg0: i32, %arg1: i32, %arg2: i32) -> (i32, i32) {
    %c0_i32 = arith.constant 0 : i32
    return %arg0, %arg1 : i32, i32
  }
}

module attributes {stable_mosaic.version = 11 : i64} {
  func.func @kernel(%arg0: i32, %arg1: i32, %arg2: i32, %arg3: memref<16x64xf32, #tpu.memory_space<vmem>>, %arg4: memref<64x128xf32, #tpu.memory_space<vmem>>, %arg5: memref<1x128xf32, #tpu.memory_space<vmem>>, %arg6: memref<16x128xf32, #tpu.memory_space<vmem>>, %arg7: memref<16x128xf32, #tpu.memory_space<vmem>>, %arg8: memref<16x128xf32, #tpu.memory_space<vmem>>) attributes {dimension_semantics = [#tpu.dimension_semantics<parallel>, #tpu.dimension_semantics<parallel>, #tpu.dimension_semantics<arbitrary>], iteration_bounds = array<i64: 1, 1, 1>, scalar_prefetch = 0 : i64, scratch_operands = 1 : i64, tpu.core_type = #tpu.core_type<tc>, window_params = [{transform_indices = @transform_0, window_bounds = array<i64: 16, 64>}, {transform_indices = @transform_1, window_bounds = array<i64: 64, 128>}, {transform_indices = @transform_2, window_bounds = array<i64: 1, 128>}, {transform_indices = @transform_3, window_bounds = array<i64: 16, 128>}, {transform_indices = @transform_4, window_bounds = array<i64: 16, 128>}]} {
    %c0_i32 = arith.constant 0 : i32
    %0 = arith.cmpi eq, %arg2, %c0_i32 : i32
    %1 = arith.extui %0 : i1 to i32
    %c0_i32_0 = arith.constant 0 : i32
    %2 = arith.cmpi ne, %1, %c0_i32_0 : i32
    scf.if %2 {
      %cst_10 = arith.constant 0.000000e+00 : f32
      %12 = vector.broadcast %cst_10 : f32 to vector<16x128xf32>
      %c0_11 = arith.constant 0 : index
      %c0_12 = arith.constant 0 : index
      %13 = vector.load %arg8[%c0_11, %c0_12] : memref<16x128xf32, #tpu.memory_space<vmem>>, vector<16x128xf32>
      tpu.vector_store %arg8[%c0_11, %c0_12], %12 {strides = array<i32>} : memref<16x128xf32, #tpu.memory_space<vmem>>, vector<16x128xf32>,
    } else {
    }
    %c0 = arith.constant 0 : index
    %c0_1 = arith.constant 0 : index
    %3 = vector.load %arg3[%c0, %c0_1] : memref<16x64xf32, #tpu.memory_space<vmem>>, vector<16x64xf32>
    %c0_2 = arith.constant 0 : index
    %c0_3 = arith.constant 0 : index
    %4 = vector.load %arg8[%c0_2, %c0_3] : memref<16x128xf32, #tpu.memory_space<vmem>>, vector<16x128xf32>
    %c0_4 = arith.constant 0 : index
    %c0_5 = arith.constant 0 : index
    %5 = vector.load %arg4[%c0_4, %c0_5] : memref<64x128xf32, #tpu.memory_space<vmem>>, vector<64x128xf32>
    %cst = arith.constant dense<0.000000e+00> : vector<16x128xf32>
    %6 = tpu.matmul %3, %5, %cst {dimension_numbers = #tpu.dot_dimension_numbers<[1], [0], [0], [1], [0, 0, 1, 1], [], []>} : vector<16x64xf32>, vector<64x128xf32>, vector<16x128xf32> -> vector<16x128xf32>
    %7 = arith.addf %4, %6 : vector<16x128xf32>
    %c0_6 = arith.constant 0 : index
    %c0_7 = arith.constant 0 : index
    %8 = vector.load %arg8[%c0_6, %c0_7] : memref<16x128xf32, #tpu.memory_space<vmem>>, vector<16x128xf32>
    tpu.vector_store %arg8[%c0_6, %c0_7], %7 {strides = array<i32>} : memref<16x128xf32, #tpu.memory_space<vmem>>, vector<16x128xf32>,
    %c0_i32_8 = arith.constant 0 : i32
    %9 = arith.cmpi eq, %arg2, %c0_i32_8 : i32
    %10 = arith.extui %9 : i1 to i32
    %c0_i32_9 = arith.constant 0 : i32
    %11 = arith.cmpi ne, %10, %c0_i32_9 : i32
    scf.if %11 {
      %c0_10 = arith.constant 0 : index
      %c0_11 = arith.constant 0 : index
      %12 = vector.load %arg8[%c0_10, %c0_11] : memref<16x128xf32, #tpu.memory_space<vmem>>, vector<16x128xf32>
      %c0_12 = arith.constant 0 : index
      %c0_13 = arith.constant 0 : index
      %13 = vector.load %arg5[%c0_12, %c0_13] : memref<1x128xf32, #tpu.memory_space<vmem>>, vector<1x128xf32>
      %14 = vector.broadcast %13 : vector<1x128xf32> to vector<16x128xf32>
      %15 = arith.addf %12, %14 : vector<16x128xf32>
      %c0_14 = arith.constant 0 : index
      %c0_15 = arith.constant 0 : index
      %16 = vector.load %arg6[%c0_14, %c0_15] : memref<16x128xf32, #tpu.memory_space<vmem>>, vector<16x128xf32>
      %17 = arith.addf %15, %16 : vector<16x128xf32>
      %c0_16 = arith.constant 0 : index
      %c0_17 = arith.constant 0 : index
      %18 = vector.load %arg7[%c0_16, %c0_17] : memref<16x128xf32, #tpu.memory_space<vmem>>, vector<16x128xf32>
      tpu.vector_store %arg7[%c0_16, %c0_17], %17 {strides = array<i32>} : memref<16x128xf32, #tpu.memory_space<vmem>>, vector<16x128xf32>,
    } else {
    }
    return
  }
  func.func @transform_0(%arg0: i32, %arg1: i32, %arg2: i32) -> (i32, i32) {
    %c0_i32 = arith.constant 0 : i32
    return %arg0, %arg2 : i32, i32
  }
  func.func @transform_1(%arg0: i32, %arg1: i32, %arg2: i32) -> (i32, i32) {
    %c0_i32 = arith.constant 0 : i32
    return %arg2, %arg1 : i32, i32
  }
  func.func @transform_2(%arg0: i32, %arg1: i32, %arg2: i32) -> (i32, i32) {
    %c0_i32 = arith.constant 0 : i32
    %c0_i32_0 = arith.constant 0 : i32
    return %c0_i32, %arg1 : i32, i32
  }
  func.func @transform_3(%arg0: i32, %arg1: i32, %arg2: i32) -> (i32, i32) {
    %c0_i32 = arith.constant 0 : i32
    return %arg0, %arg1 : i32, i32
  }
  func.func @transform_4(%arg0: i32, %arg1: i32, %arg2: i32) -> (i32, i32) {
    %c0_i32 = arith.constant 0 : i32
    return %arg0, %arg1 : i32, i32
  }
}

module attributes {stable_mosaic.version = 11 : i64} {
  func.func @_attn_kernel(%arg0: i32, %arg1: memref<1x8x192xf32, #tpu.memory_space<vmem>>, %arg2: memref<1x8x64xf32, #tpu.memory_space<vmem>>) attributes {dimension_semantics = [#tpu.dimension_semantics<parallel>], iteration_bounds = array<i64: 2>, scalar_prefetch = 0 : i64, scratch_operands = 0 : i64, tpu.core_type = #tpu.core_type<tc>, window_params = [{transform_indices = @transform_0, window_bounds = array<i64: 1, 8, 192>}, {transform_indices = @transform_1, window_bounds = array<i64: 1, 8, 64>}]} {
    %0 = tpu.iota {dimensions = array<i32: 0>} : vector<8x8xi32>
    %1 = tpu.iota {dimensions = array<i32: 1>} : vector<8x8xi32>
    %2 = arith.cmpi sge, %0, %1 : vector<8x8xi32>
    %c0 = arith.constant 0 : index
    %c0_0 = arith.constant 0 : index
    %c0_1 = arith.constant 0 : index
    %3 = vector.load %arg1[%c0, %c0_0, %c0_1] : memref<1x8x192xf32, #tpu.memory_space<vmem>>, vector<1x8x32xf32>
    %4 = vector.shape_cast %3 : vector<1x8x32xf32> to vector<8x32xf32>
    %cst = arith.constant 0.176776692 : f32
    %5 = vector.broadcast %cst : f32 to vector<8x32xf32>
    %6 = arith.mulf %4, %5 : vector<8x32xf32>
    %c0_2 = arith.constant 0 : index
    %c0_3 = arith.constant 0 : index
    %c64 = arith.constant 64 : index
    %7 = vector.load %arg1[%c0_2, %c0_3, %c64] : memref<1x8x192xf32, #tpu.memory_space<vmem>>, vector<1x8x32xf32>
    %8 = vector.shape_cast %7 : vector<1x8x32xf32> to vector<8x32xf32>
    %c0_4 = arith.constant 0 : index
    %c0_5 = arith.constant 0 : index
    %c128 = arith.constant 128 : index
    %9 = vector.load %arg1[%c0_4, %c0_5, %c128] : memref<1x8x192xf32, #tpu.memory_space<vmem>>, vector<1x8x32xf32>
    %10 = vector.shape_cast %9 : vector<1x8x32xf32> to vector<8x32xf32>
    %cst_6 = arith.constant dense<0.000000e+00> : vector<8x8xf32>
    %11 = tpu.matmul %6, %8, %cst_6 {dimension_numbers = #tpu.dot_dimension_numbers<[1], [1], [0], [0], [0, 0, 1, 0], [], []>} : vector<8x32xf32>, vector<8x32xf32>, vector<8x8xf32> -> vector<8x8xf32>
    %cst_7 = arith.constant -1.000000e+30 : f32
    %12 = vector.broadcast %cst_7 : f32 to vector<8x8xf32>
    %13 = arith.select %2, %11, %12 : vector<8x8xi1>, vector<8x8xf32>
    %cst_8 = arith.constant dense<0xFF800000> : vector<8xf32>
    %14 = vector.multi_reduction <maximumf>, %13, %cst_8 [1] : vector<8x8xf32> to vector<8xf32>
    %15 = vector.shape_cast %14 : vector<8xf32> to vector<8x1xf32>
    %16 = vector.broadcast %15 : vector<8x1xf32> to vector<8x8xf32>
    %17 = arith.subf %13, %16 : vector<8x8xf32>
    %18 = math.exp %17 : vector<8x8xf32>
    %cst_9 = arith.constant dense<0.000000e+00> : vector<8xf32>
    %19 = vector.multi_reduction <add>, %18, %cst_9 [1] : vector<8x8xf32> to vector<8xf32>
    %20 = vector.shape_cast %19 : vector<8xf32> to vector<8x1xf32>
    %cst_10 = arith.constant dense<0.000000e+00> : vector<8x32xf32>
    %21 = tpu.matmul %18, %10, %cst_10 {dimension_numbers = #tpu.dot_dimension_numbers<[1], [0], [0], [1], [0, 0, 1, 1], [], []>} : vector<8x8xf32>, vector<8x32xf32>, vector<8x32xf32> -> vector<8x32xf32>
    %22 = tpu.reciprocal %20 {approx = true} : vector<8x1xf32> -> vector<8x1xf32>
    %23 = vector.broadcast %22 : vector<8x1xf32> to vector<8x32xf32>
    %24 = arith.mulf %21, %23 : vector<8x32xf32>
    %c0_11 = arith.constant 0 : index
    %c0_12 = arith.constant 0 : index
    %c32 = arith.constant 32 : index
    %25 = vector.load %arg1[%c0_11, %c0_12, %c32] : memref<1x8x192xf32, #tpu.memory_space<vmem>>, vector<1x8x32xf32>
    %26 = vector.shape_cast %25 : vector<1x8x32xf32> to vector<8x32xf32>
    %cst_13 = arith.constant 0.176776692 : f32
    %27 = vector.broadcast %cst_13 : f32 to vector<8x32xf32>
    %28 = arith.mulf %26, %27 : vector<8x32xf32>
    %c0_14 = arith.constant 0 : index
    %c0_15 = arith.constant 0 : index
    %c96 = arith.constant 96 : index
    %29 = vector.load %arg1[%c0_14, %c0_15, %c96] : memref<1x8x192xf32, #tpu.memory_space<vmem>>, vector<1x8x32xf32>
    %30 = vector.shape_cast %29 : vector<1x8x32xf32> to vector<8x32xf32>
    %c0_16 = arith.constant 0 : index
    %c0_17 = arith.constant 0 : index
    %c160 = arith.constant 160 : index
    %31 = vector.load %arg1[%c0_16, %c0_17, %c160] : memref<1x8x192xf32, #tpu.memory_space<vmem>>, vector<1x8x32xf32>
    %32 = vector.shape_cast %31 : vector<1x8x32xf32> to vector<8x32xf32>
    %cst_18 = arith.constant dense<0.000000e+00> : vector<8x8xf32>
    %33 = tpu.matmul %28, %30, %cst_18 {dimension_numbers = #tpu.dot_dimension_numbers<[1], [1], [0], [0], [0, 0, 1, 0], [], []>} : vector<8x32xf32>, vector<8x32xf32>, vector<8x8xf32> -> vector<8x8xf32>
    %cst_19 = arith.constant -1.000000e+30 : f32
    %34 = vector.broadcast %cst_19 : f32 to vector<8x8xf32>
    %35 = arith.select %2, %33, %34 : vector<8x8xi1>, vector<8x8xf32>
    %cst_20 = arith.constant dense<0xFF800000> : vector<8xf32>
    %36 = vector.multi_reduction <maximumf>, %35, %cst_20 [1] : vector<8x8xf32> to vector<8xf32>
    %37 = vector.shape_cast %36 : vector<8xf32> to vector<8x1xf32>
    %38 = vector.broadcast %37 : vector<8x1xf32> to vector<8x8xf32>
    %39 = arith.subf %35, %38 : vector<8x8xf32>
    %40 = math.exp %39 : vector<8x8xf32>
    %cst_21 = arith.constant dense<0.000000e+00> : vector<8xf32>
    %41 = vector.multi_reduction <add>, %40, %cst_21 [1] : vector<8x8xf32> to vector<8xf32>
    %42 = vector.shape_cast %41 : vector<8xf32> to vector<8x1xf32>
    %cst_22 = arith.constant dense<0.000000e+00> : vector<8x32xf32>
    %43 = tpu.matmul %40, %32, %cst_22 {dimension_numbers = #tpu.dot_dimension_numbers<[1], [0], [0], [1], [0, 0, 1, 1], [], []>} : vector<8x8xf32>, vector<8x32xf32>, vector<8x32xf32> -> vector<8x32xf32>
    %44 = tpu.reciprocal %42 {approx = true} : vector<8x1xf32> -> vector<8x1xf32>
    %45 = vector.broadcast %44 : vector<8x1xf32> to vector<8x32xf32>
    %46 = arith.mulf %43, %45 : vector<8x32xf32>
    %47 = tpu.concatenate %24, %46 in 1 : vector<8x32xf32>, vector<8x32xf32> -> vector<8x64xf32>
    %c0_23 = arith.constant 0 : index
    %c0_24 = arith.constant 0 : index
    %c0_25 = arith.constant 0 : index
    %48 = vector.load %arg2[%c0_23, %c0_24, %c0_25] : memref<1x8x64xf32, #tpu.memory_space<vmem>>, vector<1x8x64xf32>
    %49 = vector.shape_cast %48 : vector<1x8x64xf32> to vector<8x64xf32>
    %50 = vector.shape_cast %47 : vector<8x64xf32> to vector<1x8x64xf32>
    tpu.vector_store %arg2[%c0_23, %c0_24, %c0_25], %50 {strides = array<i32>} : memref<1x8x64xf32, #tpu.memory_space<vmem>>, vector<1x8x64xf32>,
    return
  }
  func.func @transform_0(%arg0: i32) -> (i32, i32, i32) {
    %c0_i32 = arith.constant 0 : i32
    %c0_i32_0 = arith.constant 0 : i32
    %c0_i32_1 = arith.constant 0 : i32
    return %arg0, %c0_i32, %c0_i32_0 : i32, i32, i32
  }
  func.func @transform_1(%arg0: i32) -> (i32, i32, i32) {
    %c0_i32 = arith.constant 0 : i32
    %c0_i32_0 = arith.constant 0 : i32
    %c0_i32_1 = arith.constant 0 : i32
    return %arg0, %c0_i32, %c0_i32_0 : i32, i32, i32
  }
}

module attributes {stable_mosaic.version = 11 : i64} {
  func.func @kernel(%arg0: i32, %arg1: i32, %arg2: i32, %arg3: memref<16x64xf32, #tpu.memory_space<vmem>>, %arg4: memref<64x256xf32, #tpu.memory_space<vmem>>, %arg5: memref<1x64xf32, #tpu.memory_space<vmem>>, %arg6: memref<1x64xf32, #tpu.memory_space<vmem>>, %arg7: memref<1x256xf32, #tpu.memory_space<vmem>>, %arg8: memref<16x256xf32, #tpu.memory_space<vmem>>, %arg9: memref<16x256xf32, #tpu.memory_space<vmem>>) attributes {dimension_semantics = [#tpu.dimension_semantics<parallel>, #tpu.dimension_semantics<parallel>, #tpu.dimension_semantics<arbitrary>], iteration_bounds = array<i64: 1, 1, 1>, scalar_prefetch = 0 : i64, scratch_operands = 1 : i64, tpu.core_type = #tpu.core_type<tc>, window_params = [{transform_indices = @transform_0, window_bounds = array<i64: 16, 64>}, {transform_indices = @transform_1, window_bounds = array<i64: 64, 256>}, {pipeline_mode = #tpu.pipeline_mode<synchronous>, transform_indices = @transform_2, window_bounds = array<i64: 1, 64>}, {pipeline_mode = #tpu.pipeline_mode<synchronous>, transform_indices = @transform_3, window_bounds = array<i64: 1, 64>}, {transform_indices = @transform_4, window_bounds = array<i64: 1, 256>}, {transform_indices = @transform_5, window_bounds = array<i64: 16, 256>}]} {
    %c0_i32 = arith.constant 0 : i32
    %0 = arith.cmpi eq, %arg2, %c0_i32 : i32
    %1 = arith.extui %0 : i1 to i32
    %c0_i32_0 = arith.constant 0 : i32
    %2 = arith.cmpi ne, %1, %c0_i32_0 : i32
    scf.if %2 {
      %cst_19 = arith.constant 0.000000e+00 : f32
      %34 = vector.broadcast %cst_19 : f32 to vector<16x256xf32>
      %c0_20 = arith.constant 0 : index
      %c0_21 = arith.constant 0 : index
      %35 = vector.load %arg9[%c0_20, %c0_21] : memref<16x256xf32, #tpu.memory_space<vmem>>, vector<16x256xf32>
      tpu.vector_store %arg9[%c0_20, %c0_21], %34 {strides = array<i32>} : memref<16x256xf32, #tpu.memory_space<vmem>>, vector<16x256xf32>,
    } else {
    }
    %c0 = arith.constant 0 : index
    %c0_1 = arith.constant 0 : index
    %3 = vector.load %arg3[%c0, %c0_1] : memref<16x64xf32, #tpu.memory_space<vmem>>, vector<16x64xf32>
    %cst = arith.constant dense<0.000000e+00> : vector<16xf32>
    %4 = vector.multi_reduction <add>, %3, %cst [1] : vector<16x64xf32> to vector<16xf32>
    %5 = vector.shape_cast %4 : vector<16xf32> to vector<16x1xf32>
    %cst_2 = arith.constant 1.562500e-02 : f32
    %6 = vector.broadcast %cst_2 : f32 to vector<16x1xf32>
    %7 = arith.mulf %5, %6 : vector<16x1xf32>
    %8 = vector.broadcast %7 : vector<16x1xf32> to vector<16x64xf32>
    %9 = arith.subf %3, %8 : vector<16x64xf32>
    %10 = arith.mulf %9, %9 : vector<16x64xf32>
    %cst_3 = arith.constant dense<0.000000e+00> : vector<16xf32>
    %11 = vector.multi_reduction <add>, %10, %cst_3 [1] : vector<16x64xf32> to vector<16xf32>
    %12 = vector.shape_cast %11 : vector<16xf32> to vector<16x1xf32>
    %cst_4 = arith.constant 1.562500e-02 : f32
    %13 = vector.broadcast %cst_4 : f32 to vector<16x1xf32>
    %14 = arith.mulf %12, %13 : vector<16x1xf32>
    %cst_5 = arith.constant 9.99999974E-6 : f32
    %15 = vector.broadcast %cst_5 : f32 to vector<16x1xf32>
    %16 = arith.addf %14, %15 : vector<16x1xf32>
    %17 = math.rsqrt %16 : vector<16x1xf32>
    %18 = vector.broadcast %17 : vector<16x1xf32> to vector<16x64xf32>
    %19 = arith.mulf %9, %18 : vector<16x64xf32>
    %c0_6 = arith.constant 0 : index
    %c0_7 = arith.constant 0 : index
    %20 = vector.load %arg5[%c0_6, %c0_7] : memref<1x64xf32, #tpu.memory_space<vmem>>, vector<1x64xf32>
    %21 = vector.broadcast %20 : vector<1x64xf32> to vector<16x64xf32>
    %22 = arith.mulf %21, %19 : vector<16x64xf32>
    %c0_8 = arith.constant 0 : index
    %c0_9 = arith.constant 0 : index
    %23 = vector.load %arg6[%c0_8, %c0_9] : memref<1x64xf32, #tpu.memory_space<vmem>>, vector<1x64xf32>
    %24 = vector.broadcast %23 : vector<1x64xf32> to vector<16x64xf32>
    %25 = arith.addf %22, %24 : vector<16x64xf32>
    %c0_10 = arith.constant 0 : index
    %c0_11 = arith.constant 0 : index
    %26 = vector.load %arg9[%c0_10, %c0_11] : memref<16x256xf32, #tpu.memory_space<vmem>>, vector<16x256xf32>
    %c0_12 = arith.constant 0 : index
    %c0_13 = arith.constant 0 : index
    %27 = vector.load %arg4[%c0_12, %c0_13] : memref<64x256xf32, #tpu.memory_space<vmem>>, vector<64x256xf32>
    %cst_14 = arith.constant dense<0.000000e+00> : vector<16x256xf32>
    %28 = tpu.matmul %25, %27, %cst_14 {dimension_numbers = #tpu.dot_dimension_numbers<[1], [0], [0], [1], [0, 0, 1, 1], [], []>} : vector<16x64xf32>, vector<64x256xf32>, vector<16x256xf32> -> vector<16x256xf32>
    %29 = arith.addf %26, %28 : vector<16x256xf32>
    %c0_15 = arith.constant 0 : index
    %c0_16 = arith.constant 0 : index
    %30 = vector.load %arg9[%c0_15, %c0_16] : memref<16x256xf32, #tpu.memory_space<vmem>>, vector<16x256xf32>
    tpu.vector_store %arg9[%c0_15, %c0_16], %29 {strides = array<i32>} : memref<16x256xf32, #tpu.memory_space<vmem>>, vector<16x256xf32>,
    %c0_i32_17 = arith.constant 0 : i32
    %31 = arith.cmpi eq, %arg2, %c0_i32_17 : i32
    %32 = arith.extui %31 : i1 to i32
    %c0_i32_18 = arith.constant 0 : i32
    %33 = arith.cmpi ne, %32, %c0_i32_18 : i32
    scf.if %33 {
      %c0_19 = arith.constant 0 : index
      %c0_20 = arith.constant 0 : index
      %34 = vector.load %arg9[%c0_19, %c0_20] : memref<16x256xf32, #tpu.memory_space<vmem>>, vector<16x256xf32>
      %c0_21 = arith.constant 0 : index
      %c0_22 = arith.constant 0 : index
      %35 = vector.load %arg7[%c0_21, %c0_22] : memref<1x256xf32, #tpu.memory_space<vmem>>, vector<1x256xf32>
      %36 = vector.broadcast %35 : vector<1x256xf32> to vector<16x256xf32>
      %37 = arith.addf %34, %36 : vector<16x256xf32>
      %cst_23 = arith.constant 5.000000e-01 : f32
      %38 = vector.broadcast %cst_23 : f32 to vector<16x256xf32>
      %39 = arith.mulf %38, %37 : vector<16x256xf32>
      %cst_24 = arith.constant 4.471500e-02 : f32
      %40 = vector.broadcast %cst_24 : f32 to vector<16x256xf32>
      %41 = arith.mulf %40, %37 : vector<16x256xf32>
      %42 = arith.mulf %41, %37 : vector<16x256xf32>
      %43 = arith.mulf %42, %37 : vector<16x256xf32>
      %44 = arith.addf %37, %43 : vector<16x256xf32>
      %cst_25 = arith.constant 0.797884583 : f32
      %45 = vector.broadcast %cst_25 : f32 to vector<16x256xf32>
      %46 = arith.mulf %45, %44 : vector<16x256xf32>
      %47 = math.tanh %46 : vector<16x256xf32>
      %cst_26 = arith.constant 1.000000e+00 : f32
      %48 = vector.broadcast %cst_26 : f32 to vector<16x256xf32>
      %49 = arith.addf %48, %47 : vector<16x256xf32>
      %50 = arith.mulf %39, %49 : vector<16x256xf32>
      %c0_27 = arith.constant 0 : index
      %c0_28 = arith.constant 0 : index
      %51 = vector.load %arg8[%c0_27, %c0_28] : memref<16x256xf32, #tpu.memory_space<vmem>>, vector<16x256xf32>
      tpu.vector_store %arg8[%c0_27, %c0_28], %50 {strides = array<i32>} : memref<16x256xf32, #tpu.memory_space<vmem>>, vector<16x256xf32>,
    } else {
    }
    return
  }
  func.func @transform_0(%arg0: i32, %arg1: i32, %arg2: i32) -> (i32, i32) {
    %c0_i32 = arith.constant 0 : i32
    return %arg0, %arg2 : i32, i32
  }
  func.func @transform_1(%arg0: i32, %arg1: i32, %arg2: i32) -> (i32, i32) {
    %c0_i32 = arith.constant 0 : i32
    return %arg2, %arg1 : i32, i32
  }
  func.func @transform_2(%arg0: i32, %arg1: i32, %arg2: i32) -> (i32, i32) {
    %c0_i32 = arith.constant 0 : i32
    %c0_i32_0 = arith.constant 0 : i32
    %c0_i32_1 = arith.constant 0 : i32
    return %c0_i32, %c0_i32_0 : i32, i32
  }
  func.func @transform_3(%arg0: i32, %arg1: i32, %arg2: i32) -> (i32, i32) {
    %c0_i32 = arith.constant 0 : i32
    %c0_i32_0 = arith.constant 0 : i32
    %c0_i32_1 = arith.constant 0 : i32
    return %c0_i32, %c0_i32_0 : i32, i32
  }
  func.func @transform_4(%arg0: i32, %arg1: i32, %arg2: i32) -> (i32, i32) {
    %c0_i32 = arith.constant 0 : i32
    %c0_i32_0 = arith.constant 0 : i32
    return %c0_i32, %arg1 : i32, i32
  }
  func.func @transform_5(%arg0: i32, %arg1: i32, %arg2: i32) -> (i32, i32) {
    %c0_i32 = arith.constant 0 : i32
    return %arg0, %arg1 : i32, i32
  }
}

module attributes {stable_mosaic.version = 11 : i64} {
  func.func @kernel(%arg0: i32, %arg1: i32, %arg2: i32, %arg3: memref<16x64xf32, #tpu.memory_space<vmem>>, %arg4: memref<64x128xf32, #tpu.memory_space<vmem>>, %arg5: memref<1x64xf32, #tpu.memory_space<vmem>>, %arg6: memref<1x64xf32, #tpu.memory_space<vmem>>, %arg7: memref<16x128xf32, #tpu.memory_space<vmem>>, %arg8: memref<16x128xf32, #tpu.memory_space<vmem>>) attributes {dimension_semantics = [#tpu.dimension_semantics<parallel>, #tpu.dimension_semantics<parallel>, #tpu.dimension_semantics<arbitrary>], iteration_bounds = array<i64: 1, 1, 1>, scalar_prefetch = 0 : i64, scratch_operands = 1 : i64, tpu.core_type = #tpu.core_type<tc>, window_params = [{transform_indices = @transform_0, window_bounds = array<i64: 16, 64>}, {transform_indices = @transform_1, window_bounds = array<i64: 64, 128>}, {pipeline_mode = #tpu.pipeline_mode<synchronous>, transform_indices = @transform_2, window_bounds = array<i64: 1, 64>}, {pipeline_mode = #tpu.pipeline_mode<synchronous>, transform_indices = @transform_3, window_bounds = array<i64: 1, 64>}, {transform_indices = @transform_4, window_bounds = array<i64: 16, 128>}]} {
    %c0_i32 = arith.constant 0 : i32
    %0 = arith.cmpi eq, %arg2, %c0_i32 : i32
    %1 = arith.extui %0 : i1 to i32
    %c0_i32_0 = arith.constant 0 : i32
    %2 = arith.cmpi ne, %1, %c0_i32_0 : i32
    scf.if %2 {
      %cst_19 = arith.constant 0.000000e+00 : f32
      %34 = vector.broadcast %cst_19 : f32 to vector<16x128xf32>
      %c0_20 = arith.constant 0 : index
      %c0_21 = arith.constant 0 : index
      %35 = vector.load %arg8[%c0_20, %c0_21] : memref<16x128xf32, #tpu.memory_space<vmem>>, vector<16x128xf32>
      tpu.vector_store %arg8[%c0_20, %c0_21], %34 {strides = array<i32>} : memref<16x128xf32, #tpu.memory_space<vmem>>, vector<16x128xf32>,
    } else {
    }
    %c0 = arith.constant 0 : index
    %c0_1 = arith.constant 0 : index
    %3 = vector.load %arg3[%c0, %c0_1] : memref<16x64xf32, #tpu.memory_space<vmem>>, vector<16x64xf32>
    %cst = arith.constant dense<0.000000e+00> : vector<16xf32>
    %4 = vector.multi_reduction <add>, %3, %cst [1] : vector<16x64xf32> to vector<16xf32>
    %5 = vector.shape_cast %4 : vector<16xf32> to vector<16x1xf32>
    %cst_2 = arith.constant 1.562500e-02 : f32
    %6 = vector.broadcast %cst_2 : f32 to vector<16x1xf32>
    %7 = arith.mulf %5, %6 : vector<16x1xf32>
    %8 = vector.broadcast %7 : vector<16x1xf32> to vector<16x64xf32>
    %9 = arith.subf %3, %8 : vector<16x64xf32>
    %10 = arith.mulf %9, %9 : vector<16x64xf32>
    %cst_3 = arith.constant dense<0.000000e+00> : vector<16xf32>
    %11 = vector.multi_reduction <add>, %10, %cst_3 [1] : vector<16x64xf32> to vector<16xf32>
    %12 = vector.shape_cast %11 : vector<16xf32> to vector<16x1xf32>
    %cst_4 = arith.constant 1.562500e-02 : f32
    %13 = vector.broadcast %cst_4 : f32 to vector<16x1xf32>
    %14 = arith.mulf %12, %13 : vector<16x1xf32>
    %cst_5 = arith.constant 9.99999974E-6 : f32
    %15 = vector.broadcast %cst_5 : f32 to vector<16x1xf32>
    %16 = arith.addf %14, %15 : vector<16x1xf32>
    %17 = math.rsqrt %16 : vector<16x1xf32>
    %18 = vector.broadcast %17 : vector<16x1xf32> to vector<16x64xf32>
    %19 = arith.mulf %9, %18 : vector<16x64xf32>
    %c0_6 = arith.constant 0 : index
    %c0_7 = arith.constant 0 : index
    %20 = vector.load %arg5[%c0_6, %c0_7] : memref<1x64xf32, #tpu.memory_space<vmem>>, vector<1x64xf32>
    %21 = vector.broadcast %20 : vector<1x64xf32> to vector<16x64xf32>
    %22 = arith.mulf %21, %19 : vector<16x64xf32>
    %c0_8 = arith.constant 0 : index
    %c0_9 = arith.constant 0 : index
    %23 = vector.load %arg6[%c0_8, %c0_9] : memref<1x64xf32, #tpu.memory_space<vmem>>, vector<1x64xf32>
    %24 = vector.broadcast %23 : vector<1x64xf32> to vector<16x64xf32>
    %25 = arith.addf %22, %24 : vector<16x64xf32>
    %c0_10 = arith.constant 0 : index
    %c0_11 = arith.constant 0 : index
    %26 = vector.load %arg8[%c0_10, %c0_11] : memref<16x128xf32, #tpu.memory_space<vmem>>, vector<16x128xf32>
    %c0_12 = arith.constant 0 : index
    %c0_13 = arith.constant 0 : index
    %27 = vector.load %arg4[%c0_12, %c0_13] : memref<64x128xf32, #tpu.memory_space<vmem>>, vector<64x128xf32>
    %cst_14 = arith.constant dense<0.000000e+00> : vector<16x128xf32>
    %28 = tpu.matmul %25, %27, %cst_14 {dimension_numbers = #tpu.dot_dimension_numbers<[1], [0], [0], [1], [0, 0, 1, 1], [], []>} : vector<16x64xf32>, vector<64x128xf32>, vector<16x128xf32> -> vector<16x128xf32>
    %29 = arith.addf %26, %28 : vector<16x128xf32>
    %c0_15 = arith.constant 0 : index
    %c0_16 = arith.constant 0 : index
    %30 = vector.load %arg8[%c0_15, %c0_16] : memref<16x128xf32, #tpu.memory_space<vmem>>, vector<16x128xf32>
    tpu.vector_store %arg8[%c0_15, %c0_16], %29 {strides = array<i32>} : memref<16x128xf32, #tpu.memory_space<vmem>>, vector<16x128xf32>,
    %c0_i32_17 = arith.constant 0 : i32
    %31 = arith.cmpi eq, %arg2, %c0_i32_17 : i32
    %32 = arith.extui %31 : i1 to i32
    %c0_i32_18 = arith.constant 0 : i32
    %33 = arith.cmpi ne, %32, %c0_i32_18 : i32
    scf.if %33 {
      %c0_19 = arith.constant 0 : index
      %c0_20 = arith.constant 0 : index
      %34 = vector.load %arg8[%c0_19, %c0_20] : memref<16x128xf32, #tpu.memory_space<vmem>>, vector<16x128xf32>
      %c0_21 = arith.constant 0 : index
      %c0_22 = arith.constant 0 : index
      %35 = vector.load %arg7[%c0_21, %c0_22] : memref<16x128xf32, #tpu.memory_space<vmem>>, vector<16x128xf32>
      tpu.vector_store %arg7[%c0_21, %c0_22], %34 {strides = array<i32>} : memref<16x128xf32, #tpu.memory_space<vmem>>, vector<16x128xf32>,
    } else {
    }
    return
  }
  func.func @transform_0(%arg0: i32, %arg1: i32, %arg2: i32) -> (i32, i32) {
    %c0_i32 = arith.constant 0 : i32
    return %arg0, %arg2 : i32, i32
  }
  func.func @transform_1(%arg0: i32, %arg1: i32, %arg2: i32) -> (i32, i32) {
    %c0_i32 = arith.constant 0 : i32
    return %arg2, %arg1 : i32, i32
  }
  func.func @transform_2(%arg0: i32, %arg1: i32, %arg2: i32) -> (i32, i32) {
    %c0_i32 = arith.constant 0 : i32
    %c0_i32_0 = arith.constant 0 : i32
    %c0_i32_1 = arith.constant 0 : i32
    return %c0_i32, %c0_i32_0 : i32, i32
  }
  func.func @transform_3(%arg0: i32, %arg1: i32, %arg2: i32) -> (i32, i32) {
    %c0_i32 = arith.constant 0 : i32
    %c0_i32_0 = arith.constant 0 : i32
    %c0_i32_1 = arith.constant 0 : i32
    return %c0_i32, %c0_i32_0 : i32, i32
  }
  func.func @transform_4(%arg0: i32, %arg1: i32, %arg2: i32) -> (i32, i32) {
    %c0_i32 = arith.constant 0 : i32
    return %arg0, %arg1 : i32, i32
  }
}

module attributes {stable_mosaic.version = 11 : i64} {
  func.func @kernel(%arg0: i32, %arg1: i32, %arg2: i32, %arg3: memref<16x64xf32, #tpu.memory_space<vmem>>, %arg4: memref<64x256xf32, #tpu.memory_space<vmem>>, %arg5: memref<1x64xf32, #tpu.memory_space<vmem>>, %arg6: memref<1x64xf32, #tpu.memory_space<vmem>>, %arg7: memref<1x256xf32, #tpu.memory_space<vmem>>, %arg8: memref<16x256xf32, #tpu.memory_space<vmem>>, %arg9: memref<16x256xf32, #tpu.memory_space<vmem>>) attributes {dimension_semantics = [#tpu.dimension_semantics<parallel>, #tpu.dimension_semantics<parallel>, #tpu.dimension_semantics<arbitrary>], iteration_bounds = array<i64: 1, 1, 1>, scalar_prefetch = 0 : i64, scratch_operands = 1 : i64, tpu.core_type = #tpu.core_type<tc>, window_params = [{transform_indices = @transform_0, window_bounds = array<i64: 16, 64>}, {transform_indices = @transform_1, window_bounds = array<i64: 64, 256>}, {pipeline_mode = #tpu.pipeline_mode<synchronous>, transform_indices = @transform_2, window_bounds = array<i64: 1, 64>}, {pipeline_mode = #tpu.pipeline_mode<synchronous>, transform_indices = @transform_3, window_bounds = array<i64: 1, 64>}, {transform_indices = @transform_4, window_bounds = array<i64: 1, 256>}, {transform_indices = @transform_5, window_bounds = array<i64: 16, 256>}]} {
    %c0_i32 = arith.constant 0 : i32
    %0 = arith.cmpi eq, %arg2, %c0_i32 : i32
    %1 = arith.extui %0 : i1 to i32
    %c0_i32_0 = arith.constant 0 : i32
    %2 = arith.cmpi ne, %1, %c0_i32_0 : i32
    scf.if %2 {
      %cst_19 = arith.constant 0.000000e+00 : f32
      %34 = vector.broadcast %cst_19 : f32 to vector<16x256xf32>
      %c0_20 = arith.constant 0 : index
      %c0_21 = arith.constant 0 : index
      %35 = vector.load %arg9[%c0_20, %c0_21] : memref<16x256xf32, #tpu.memory_space<vmem>>, vector<16x256xf32>
      tpu.vector_store %arg9[%c0_20, %c0_21], %34 {strides = array<i32>} : memref<16x256xf32, #tpu.memory_space<vmem>>, vector<16x256xf32>,
    } else {
    }
    %c0 = arith.constant 0 : index
    %c0_1 = arith.constant 0 : index
    %3 = vector.load %arg3[%c0, %c0_1] : memref<16x64xf32, #tpu.memory_space<vmem>>, vector<16x64xf32>
    %cst = arith.constant dense<0.000000e+00> : vector<16xf32>
    %4 = vector.multi_reduction <add>, %3, %cst [1] : vector<16x64xf32> to vector<16xf32>
    %5 = vector.shape_cast %4 : vector<16xf32> to vector<16x1xf32>
    %cst_2 = arith.constant 1.562500e-02 : f32
    %6 = vector.broadcast %cst_2 : f32 to vector<16x1xf32>
    %7 = arith.mulf %5, %6 : vector<16x1xf32>
    %8 = vector.broadcast %7 : vector<16x1xf32> to vector<16x64xf32>
    %9 = arith.subf %3, %8 : vector<16x64xf32>
    %10 = arith.mulf %9, %9 : vector<16x64xf32>
    %cst_3 = arith.constant dense<0.000000e+00> : vector<16xf32>
    %11 = vector.multi_reduction <add>, %10, %cst_3 [1] : vector<16x64xf32> to vector<16xf32>
    %12 = vector.shape_cast %11 : vector<16xf32> to vector<16x1xf32>
    %cst_4 = arith.constant 1.562500e-02 : f32
    %13 = vector.broadcast %cst_4 : f32 to vector<16x1xf32>
    %14 = arith.mulf %12, %13 : vector<16x1xf32>
    %cst_5 = arith.constant 9.99999974E-6 : f32
    %15 = vector.broadcast %cst_5 : f32 to vector<16x1xf32>
    %16 = arith.addf %14, %15 : vector<16x1xf32>
    %17 = math.rsqrt %16 : vector<16x1xf32>
    %18 = vector.broadcast %17 : vector<16x1xf32> to vector<16x64xf32>
    %19 = arith.mulf %9, %18 : vector<16x64xf32>
    %c0_6 = arith.constant 0 : index
    %c0_7 = arith.constant 0 : index
    %20 = vector.load %arg5[%c0_6, %c0_7] : memref<1x64xf32, #tpu.memory_space<vmem>>, vector<1x64xf32>
    %21 = vector.broadcast %20 : vector<1x64xf32> to vector<16x64xf32>
    %22 = arith.mulf %21, %19 : vector<16x64xf32>
    %c0_8 = arith.constant 0 : index
    %c0_9 = arith.constant 0 : index
    %23 = vector.load %arg6[%c0_8, %c0_9] : memref<1x64xf32, #tpu.memory_space<vmem>>, vector<1x64xf32>
    %24 = vector.broadcast %23 : vector<1x64xf32> to vector<16x64xf32>
    %25 = arith.addf %22, %24 : vector<16x64xf32>
    %c0_10 = arith.constant 0 : index
    %c0_11 = arith.constant 0 : index
    %26 = vector.load %arg9[%c0_10, %c0_11] : memref<16x256xf32, #tpu.memory_space<vmem>>, vector<16x256xf32>
    %c0_12 = arith.constant 0 : index
    %c0_13 = arith.constant 0 : index
    %27 = vector.load %arg4[%c0_12, %c0_13] : memref<64x256xf32, #tpu.memory_space<vmem>>, vector<64x256xf32>
    %cst_14 = arith.constant dense<0.000000e+00> : vector<16x256xf32>
    %28 = tpu.matmul %25, %27, %cst_14 {dimension_numbers = #tpu.dot_dimension_numbers<[1], [0], [0], [1], [0, 0, 1, 1], [], []>} : vector<16x64xf32>, vector<64x256xf32>, vector<16x256xf32> -> vector<16x256xf32>
    %29 = arith.addf %26, %28 : vector<16x256xf32>
    %c0_15 = arith.constant 0 : index
    %c0_16 = arith.constant 0 : index
    %30 = vector.load %arg9[%c0_15, %c0_16] : memref<16x256xf32, #tpu.memory_space<vmem>>, vector<16x256xf32>
    tpu.vector_store %arg9[%c0_15, %c0_16], %29 {strides = array<i32>} : memref<16x256xf32, #tpu.memory_space<vmem>>, vector<16x256xf32>,
    %c0_i32_17 = arith.constant 0 : i32
    %31 = arith.cmpi eq, %arg2, %c0_i32_17 : i32
    %32 = arith.extui %31 : i1 to i32
    %c0_i32_18 = arith.constant 0 : i32
    %33 = arith.cmpi ne, %32, %c0_i32_18 : i32
    scf.if %33 {
      %c0_19 = arith.constant 0 : index
      %c0_20 = arith.constant 0 : index
      %34 = vector.load %arg9[%c0_19, %c0_20] : memref<16x256xf32, #tpu.memory_space<vmem>>, vector<16x256xf32>
      %c0_21 = arith.constant 0 : index
      %c0_22 = arith.constant 0 : index
      %35 = vector.load %arg7[%c0_21, %c0_22] : memref<1x256xf32, #tpu.memory_space<vmem>>, vector<1x256xf32>
      %36 = vector.broadcast %35 : vector<1x256xf32> to vector<16x256xf32>
      %37 = arith.addf %34, %36 : vector<16x256xf32>
      %cst_23 = arith.constant 5.000000e-01 : f32
      %38 = vector.broadcast %cst_23 : f32 to vector<16x256xf32>
      %39 = arith.mulf %38, %37 : vector<16x256xf32>
      %cst_24 = arith.constant 4.471500e-02 : f32
      %40 = vector.broadcast %cst_24 : f32 to vector<16x256xf32>
      %41 = arith.mulf %40, %37 : vector<16x256xf32>
      %42 = arith.mulf %41, %37 : vector<16x256xf32>
      %43 = arith.mulf %42, %37 : vector<16x256xf32>
      %44 = arith.addf %37, %43 : vector<16x256xf32>
      %cst_25 = arith.constant 0.797884583 : f32
      %45 = vector.broadcast %cst_25 : f32 to vector<16x256xf32>
      %46 = arith.mulf %45, %44 : vector<16x256xf32>
      %47 = math.tanh %46 : vector<16x256xf32>
      %cst_26 = arith.constant 1.000000e+00 : f32
      %48 = vector.broadcast %cst_26 : f32 to vector<16x256xf32>
      %49 = arith.addf %48, %47 : vector<16x256xf32>
      %50 = arith.mulf %39, %49 : vector<16x256xf32>
      %c0_27 = arith.constant 0 : index
      %c0_28 = arith.constant 0 : index
      %51 = vector.load %arg8[%c0_27, %c0_28] : memref<16x256xf32, #tpu.memory_space<vmem>>, vector<16x256xf32>
      tpu.vector_store %arg8[%c0_27, %c0_28], %50 {strides = array<i32>} : memref<16x256xf32, #tpu.memory_space<vmem>>, vector<16x256xf32>,
    } else {
    }
    return
  }
  func.func @transform_0(%arg0: i32, %arg1: i32, %arg2: i32) -> (i32, i32) {
    %c0_i32 = arith.constant 0 : i32
    return %arg0, %arg2 : i32, i32
  }
  func.func @transform_1(%arg0: i32, %arg1: i32, %arg2: i32) -> (i32, i32) {
    %c0_i32 = arith.constant 0 : i32
    return %arg2, %arg1 : i32, i32
  }
  func.func @transform_2(%arg0: i32, %arg1: i32, %arg2: i32) -> (i32, i32) {
    %c0_i32 = arith.constant 0 : i32
    %c0_i32_0 = arith.constant 0 : i32
    %c0_i32_1 = arith.constant 0 : i32
    return %c0_i32, %c0_i32_0 : i32, i32
  }
  func.func @transform_3(%arg0: i32, %arg1: i32, %arg2: i32) -> (i32, i32) {
    %c0_i32 = arith.constant 0 : i32
    %c0_i32_0 = arith.constant 0 : i32
    %c0_i32_1 = arith.constant 0 : i32
    return %c0_i32, %c0_i32_0 : i32, i32
  }
  func.func @transform_4(%arg0: i32, %arg1: i32, %arg2: i32) -> (i32, i32) {
    %c0_i32 = arith.constant 0 : i32
    %c0_i32_0 = arith.constant 0 : i32
    return %c0_i32, %arg1 : i32, i32
  }
  func.func @transform_5(%arg0: i32, %arg1: i32, %arg2: i32) -> (i32, i32) {
    %c0_i32 = arith.constant 0 : i32
    return %arg0, %arg1 : i32, i32
  }
}

module attributes {stable_mosaic.version = 11 : i64} {
  func.func @kernel(%arg0: i32, %arg1: i32, %arg2: i32, %arg3: memref<16x256xf32, #tpu.memory_space<vmem>>, %arg4: memref<256x128xf32, #tpu.memory_space<vmem>>, %arg5: memref<1x128xf32, #tpu.memory_space<vmem>>, %arg6: memref<16x128xf32, #tpu.memory_space<vmem>>, %arg7: memref<16x128xf32, #tpu.memory_space<vmem>>, %arg8: memref<16x128xf32, #tpu.memory_space<vmem>>) attributes {dimension_semantics = [#tpu.dimension_semantics<parallel>, #tpu.dimension_semantics<parallel>, #tpu.dimension_semantics<arbitrary>], iteration_bounds = array<i64: 1, 1, 1>, scalar_prefetch = 0 : i64, scratch_operands = 1 : i64, tpu.core_type = #tpu.core_type<tc>, window_params = [{transform_indices = @transform_0, window_bounds = array<i64: 16, 256>}, {transform_indices = @transform_1, window_bounds = array<i64: 256, 128>}, {transform_indices = @transform_2, window_bounds = array<i64: 1, 128>}, {transform_indices = @transform_3, window_bounds = array<i64: 16, 128>}, {transform_indices = @transform_4, window_bounds = array<i64: 16, 128>}]} {
    %c0_i32 = arith.constant 0 : i32
    %0 = arith.cmpi eq, %arg2, %c0_i32 : i32
    %1 = arith.extui %0 : i1 to i32
    %c0_i32_0 = arith.constant 0 : i32
    %2 = arith.cmpi ne, %1, %c0_i32_0 : i32
    scf.if %2 {
      %cst_10 = arith.constant 0.000000e+00 : f32
      %12 = vector.broadcast %cst_10 : f32 to vector<16x128xf32>
      %c0_11 = arith.constant 0 : index
      %c0_12 = arith.constant 0 : index
      %13 = vector.load %arg8[%c0_11, %c0_12] : memref<16x128xf32, #tpu.memory_space<vmem>>, vector<16x128xf32>
      tpu.vector_store %arg8[%c0_11, %c0_12], %12 {strides = array<i32>} : memref<16x128xf32, #tpu.memory_space<vmem>>, vector<16x128xf32>,
    } else {
    }
    %c0 = arith.constant 0 : index
    %c0_1 = arith.constant 0 : index
    %3 = vector.load %arg3[%c0, %c0_1] : memref<16x256xf32, #tpu.memory_space<vmem>>, vector<16x256xf32>
    %c0_2 = arith.constant 0 : index
    %c0_3 = arith.constant 0 : index
    %4 = vector.load %arg8[%c0_2, %c0_3] : memref<16x128xf32, #tpu.memory_space<vmem>>, vector<16x128xf32>
    %c0_4 = arith.constant 0 : index
    %c0_5 = arith.constant 0 : index
    %5 = vector.load %arg4[%c0_4, %c0_5] : memref<256x128xf32, #tpu.memory_space<vmem>>, vector<256x128xf32>
    %cst = arith.constant dense<0.000000e+00> : vector<16x128xf32>
    %6 = tpu.matmul %3, %5, %cst {dimension_numbers = #tpu.dot_dimension_numbers<[1], [0], [0], [1], [0, 0, 1, 1], [], []>} : vector<16x256xf32>, vector<256x128xf32>, vector<16x128xf32> -> vector<16x128xf32>
    %7 = arith.addf %4, %6 : vector<16x128xf32>
    %c0_6 = arith.constant 0 : index
    %c0_7 = arith.constant 0 : index
    %8 = vector.load %arg8[%c0_6, %c0_7] : memref<16x128xf32, #tpu.memory_space<vmem>>, vector<16x128xf32>
    tpu.vector_store %arg8[%c0_6, %c0_7], %7 {strides = array<i32>} : memref<16x128xf32, #tpu.memory_space<vmem>>, vector<16x128xf32>,
    %c0_i32_8 = arith.constant 0 : i32
    %9 = arith.cmpi eq, %arg2, %c0_i32_8 : i32
    %10 = arith.extui %9 : i1 to i32
    %c0_i32_9 = arith.constant 0 : i32
    %11 = arith.cmpi ne, %10, %c0_i32_9 : i32
    scf.if %11 {
      %c0_10 = arith.constant 0 : index
      %c0_11 = arith.constant 0 : index
      %12 = vector.load %arg8[%c0_10, %c0_11] : memref<16x128xf32, #tpu.memory_space<vmem>>, vector<16x128xf32>
      %c0_12 = arith.constant 0 : index
      %c0_13 = arith.constant 0 : index
      %13 = vector.load %arg5[%c0_12, %c0_13] : memref<1x128xf32, #tpu.memory_space<vmem>>, vector<1x128xf32>
      %14 = vector.broadcast %13 : vector<1x128xf32> to vector<16x128xf32>
      %15 = arith.addf %12, %14 : vector<16x128xf32>
      %c0_14 = arith.constant 0 : index
      %c0_15 = arith.constant 0 : index
      %16 = vector.load %arg6[%c0_14, %c0_15] : memref<16x128xf32, #tpu.memory_space<vmem>>, vector<16x128xf32>
      %17 = arith.addf %15, %16 : vector<16x128xf32>
      %c0_16 = arith.constant 0 : index
      %c0_17 = arith.constant 0 : index
      %18 = vector.load %arg7[%c0_16, %c0_17] : memref<16x128xf32, #tpu.memory_space<vmem>>, vector<16x128xf32>
      tpu.vector_store %arg7[%c0_16, %c0_17], %17 {strides = array<i32>} : memref<16x128xf32, #tpu.memory_space<vmem>>, vector<16x128xf32>,
    } else {
    }
    return
  }
  func.func @transform_0(%arg0: i32, %arg1: i32, %arg2: i32) -> (i32, i32) {
    %c0_i32 = arith.constant 0 : i32
    return %arg0, %arg2 : i32, i32
  }
  func.func @transform_1(%arg0: i32, %arg1: i32, %arg2: i32) -> (i32, i32) {
    %c0_i32 = arith.constant 0 : i32
    return %arg2, %arg1 : i32, i32
  }
  func.func @transform_2(%arg0: i32, %arg1: i32, %arg2: i32) -> (i32, i32) {
    %c0_i32 = arith.constant 0 : i32
    %c0_i32_0 = arith.constant 0 : i32
    return %c0_i32, %arg1 : i32, i32
  }
  func.func @transform_3(%arg0: i32, %arg1: i32, %arg2: i32) -> (i32, i32) {
    %c0_i32 = arith.constant 0 : i32
    return %arg0, %arg1 : i32, i32
  }
  func.func @transform_4(%arg0: i32, %arg1: i32, %arg2: i32) -> (i32, i32) {
    %c0_i32 = arith.constant 0 : i32
    return %arg0, %arg1 : i32, i32
  }
}

</mosaic_0001>

<llo_original>
// kernel: gpt_forward.13
$region0: #{gpt_forward.13}
  #allocation0 [shape = 'u32[]', space=smem, size = 0x4, offset = 0x4, fixed_abs, tag = 'smem constant byte address 0x4 - core index']
  #allocation1 [shape = 'u32[72,128]{1,0:T(1,128)}', space=vmem, size = 0x9000, scoped, tag = 'internal scratch']
  #allocation2 [shape = 'f32[16,128]{1,0:T(8,128)}', space=vmem, size = 0x2000, scoped, tag = 'scratch operand']
  %s0 = inlined_call_operand.vmem [shape: f32[16,64], index: 0, kind: input, shape index: {}]
  %s1 = inlined_call_operand.hbm [shape: f32[64,64], index: 1, kind: input, shape index: {}]
  %s2 = inlined_call_operand.vmem [shape: f32[1,64], index: 2, kind: input, shape index: {}]
  %s3 = inlined_call_operand.vmem [shape: f32[16,64], index: 3, kind: input, shape index: {}]
  %s4 = inlined_call_operand.vmem [shape: f32[16,64], index: 4, kind: output, shape index: {}]
  %s5 = sld [smem:[#allocation0]]
  $region38: #{gpt_forward.13} parent=0
    _
  %s7 = ssub.s32 1, %s5
  %s8 = scalar_select 0, %s7, %s5
  $region1: #{gpt_forward.13} parent=0
    #allocation3 [shape = 'u8[32768]{0}', space=vmem, size = 0x8000, scoped, tag = 'input window, operand 1, single buffered']
    #allocation4 [shape = 's32[1]{0}', space=sflag, size = 0x4, scoped, tag = 'scoped memory for gpt_forward.13']
    %9 = vsyncpa [#allocation4], 0
    // Predicated region
    $region2: #{gpt_forward.13} parent=1 // pred_check
      _
    $region3: #{gpt_forward.13} parent=1 // pred_check_branch
      %11 = sbr.rel (0) target = $region5
    $region4: #{gpt_forward.13} parent=1 // pred_region
      _
    $region5: #{gpt_forward.13} parent=1 // pred_fallthru
      _
    // Predicated region
    $region6: #{gpt_forward.13} parent=1 // pred_check
      _
    $region7: #{gpt_forward.13} parent=1 // pred_check_branch
      %13 = sbr.rel (0) target = $region9
    $region8: #{gpt_forward.13} parent=1 // pred_region
      %15 = vsyncadd [#allocation4], 0
      %s16 = sshll.u32 %s1, 4
      %s17 = int_to_ptr.hbm [resolvable:$true] %s16
      %s18 = sshll.u32 [#allocation3], 4
      %s19 = int_to_ptr.vmem [resolvable:$true] %s18
      %24 = dma.hbm_to_vmem [thread:$0]  %s17, 1024, %s19, [#allocation4], 128, 128, 8
    $region9: #{gpt_forward.13} parent=1 // pred_fallthru
      _
    // Predicated region
    $region10: #{gpt_forward.13} parent=1 // pred_check
      _
    $region11: #{gpt_forward.13} parent=1 // pred_check_branch
      %26 = sbr.rel (0) target = $region13
    $region12: #{gpt_forward.13} parent=1 // pred_region
      _
    $region13: #{gpt_forward.13} parent=1 // pred_fallthru
      _
    // Predicated region
    $region14: #{gpt_forward.13} parent=1 // pred_check
      _
    $region15: #{gpt_forward.13} parent=1 // pred_check_branch
      %28 = sbr.rel (0) target = $region17
    $region16: #{gpt_forward.13} parent=1 // pred_region
      _
    $region17: #{gpt_forward.13} parent=1 // pred_fallthru
      _
    // Predicated region
    $region18: #{gpt_forward.13} parent=1 // pred_check
      _
    $region19: #{gpt_forward.13} parent=1 // pred_check_branch
      %30 = sbr.rel (0) target = $region21
    $region20: #{gpt_forward.13} parent=1 // pred_region
      %32 = dma.done [#allocation4], 1024
    $region21: #{gpt_forward.13} parent=1 // pred_fallthru
      _
    %p33 = scmp.eq.s32.totalorder 0, 0
    // Predicated region
    $region22: #{gpt_forward.13} parent=1 // pred_check
      %p34 = pneg %p33
    $region23: #{gpt_forward.13} parent=1 // pred_check_branch
      %36 = sbr.rel (%p34) target = $region25
    $region24: #{gpt_forward.13} parent=1 // pred_region
      %37 = vst [vmem:[#allocation2] sm:$0xff] 0.0
      %38 = vst [vmem:[#allocation2 + $0x8] sm:$0xff] 0.0
    $region25: #{gpt_forward.13} parent=1 // pred_fallthru
      _
    %v39 = vld [vmem:[%s0] sm:$0xff]
    %v40 = vld [vmem:[%s0 + $0x8] sm:$0xff]
    %v41 = vld [vmem:[#allocation2] sm:$0xff]
    %v42 = vld [vmem:[#allocation2 + $0x8] sm:$0xff]
    %v43 = vld [vmem:[#allocation3] sm:$0xff]
    %v44 = vld [vmem:[#allocation3 + $0x8] sm:$0xff]
    %v45 = vld [vmem:[#allocation3 + $0x10] sm:$0xff]
    %v46 = vld [vmem:[#allocation3 + $0x18] sm:$0xff]
    %v47 = vld [vmem:[#allocation3 + $0x20] sm:$0xff]
    %v48 = vld [vmem:[#allocation3 + $0x28] sm:$0xff]
    %v49 = vld [vmem:[#allocation3 + $0x30] sm:$0xff]
    %v50 = vld [vmem:[#allocation3 + $0x38] sm:$0xff]
    %vm51 = vcmask 523264
    %v53 = vsel %vm51, %v39, 0
    %v56 = vsel %vm51, %v40, 0
    %58 = vmatpush.msra.mxu0 0.0
    %59 = vmatpush.msra.mxu0 0.0
    %60 = vmatpush.msra.mxu0 0.0
    %61 = vmatpush.msra.mxu0 0.0
    %62 = vmatpush.msra.mxu0 0.0
    %63 = vmatpush.msra.mxu0 0.0
    %64 = vmatpush.msra.mxu0 0.0
    %65 = vmatpush.msra.mxu0 0.0
    %66 = vmatpush.msra.mxu0 %v50
    %67 = vmatpush.msra.mxu0 %v49
    %68 = vmatpush.msra.mxu0 %v48
    %69 = vmatpush.msra.mxu0 %v47
    %70 = vmatpush.msra.mxu0 %v46
    %71 = vmatpush.msra.mxu0 %v45
    %72 = vmatpush.msra.mxu0 %v44
    %73 = vmatpush.msra.mxu0 %v43
    %74 = vmatmul.f32.gmra.mxu0 %v53
    %v75 = vpop.f32.mrf.mxu0
    %v76 = vadd.f32 0.0, %v75
    %77 = vmatmul.f32.gmra.mxu0 %v56
    %v78 = vpop.f32.mrf.mxu0
    %v79 = vadd.f32 0.0, %v78
    %80 = vdwg.mxu0
    %v81 = vadd.f32 %v41, %v76
    %v82 = vadd.f32 %v42, %v79
    %83 = vst [vmem:[#allocation2] sm:$0xff] %v81
    %84 = vst [vmem:[#allocation2 + $0x8] sm:$0xff] %v82
    // Predicated region
    $region26: #{gpt_forward.13} parent=1 // pred_check
      %p85 = pneg %p33
    $region27: #{gpt_forward.13} parent=1 // pred_check_branch
      %87 = sbr.rel (%p85) target = $region29
    $region28: #{gpt_forward.13} parent=1 // pred_region
      %v88 = vld [vmem:[#allocation2] sm:$0xff]
      %v89 = vld [vmem:[#allocation2 + $0x8] sm:$0xff]
      %v90 = vld [vmem:[%s2] sm:$0x1]
      %v92 = vperm.slane %v90, 0
      %v94 = vadd.f32 %v88, %v92
      %v95 = vadd.f32 %v89, %v92
      %v96 = vld [vmem:[%s3] sm:$0xff]
      %v97 = vld [vmem:[%s3 + $0x8] sm:$0xff]
      %v98 = vadd.f32 %v94, %v96
      %v99 = vadd.f32 %v95, %v97
      %100 = vst [vmem:[%s4] sm:$0xff] %v98
      %101 = vst [vmem:[%s4 + $0x8] sm:$0xff] %v99
    $region29: #{gpt_forward.13} parent=1 // pred_fallthru
      _
    // Predicated region
    $region30: #{gpt_forward.13} parent=1 // pred_check
      _
    $region31: #{gpt_forward.13} parent=1 // pred_check_branch
      %103 = sbr.rel (0) target = $region33
    $region32: #{gpt_forward.13} parent=1 // pred_region
      _
    $region33: #{gpt_forward.13} parent=1 // pred_fallthru
      _
    // Predicated region
    $region34: #{gpt_forward.13} parent=1 // pred_check
      _
    $region35: #{gpt_forward.13} parent=1 // pred_check_branch
      %105 = sbr.rel (0) target = $region37
    $region36: #{gpt_forward.13} parent=1 // pred_region
      _
    $region37: #{gpt_forward.13} parent=1 // pred_fallthru
      _
    %106 = vsyncpa [#allocation4], 1

// kernel: gpt_forward.12
$region0: #{gpt_forward.12}
  #allocation0 [shape = 'u32[]', space=smem, size = 0x4, offset = 0x4, fixed_abs, tag = 'smem constant byte address 0x4 - core index']
  #allocation1 [shape = 'u32[72,128]{1,0:T(1,128)}', space=vmem, size = 0x9000, scoped, tag = 'internal scratch']
  %s0 = inlined_call_operand.vmem [shape: f32[2,8,192], index: 0, kind: input, shape index: {}]
  %s1 = inlined_call_operand.vmem [shape: f32[2,8,64], index: 1, kind: output, shape index: {}]
  %s2 = sld [smem:[#allocation0]]
  $region37: #{gpt_forward.12} parent=0
    _
  %s4 = ssub.s32 1, %s2
  %s5 = scalar_select 0, %s4, %s2
  loop: start=0, step=1, limit=4
  $region2: #{gpt_forward.12} parent=0 // loop_pre_header
    _
  $region3: #{gpt_forward.12} parent=0 // loop_header
    %s7 = sphi 0, %s11
    %p8 = scmp.ge.s32.totalorder %s7, 4
    %s17 = sphi 0, %s19
    %s20 = sphi 0, %s17
    %s21 = sphi 0, %s20
    %s37 = sphi 0, %s21
    %s43 = sphi 0, %s45
    %s46 = sphi 0, %s43
    %s47 = sphi 0, %s46
    %s63 = sphi 0, %s47
  $region4: #{gpt_forward.12} parent=0 // loop_header_branch
    %10 = sbr.rel (%p8) target = $region8
  $region5: #{gpt_forward.12} parent=0 // loop_body
    %s12 = ssub.s32 %s7, 1
    %s13 = ssub.s32 %s7, 2
    %s14 = sadd.s32 %s7, 1
    %s15 = ssub.s32 %s7, %s14
    %p16 = scmp.eq.s32.totalorder %s15, 0
    %s18 = sadd.s32 %s17, 1
    %s19 = scalar_select %p16, %s17, %s18
    %p22 = pneg %p16
    %p23 = scmp.eq.s32.totalorder %s7, 1
    %p24 = por %p22, %p23
    %p25 = scmp.ne.s32.totalorder %s17, %s20
    %p26 = scmp.eq.s32.totalorder %s7, 0
    %p27 = por %p25, %p26
    %p28 = scmp.ne.s32.totalorder %s17, %s20
    %p29 = scmp.eq.s32.totalorder %s12, 1
    %p30 = por %p28, %p29
    %p31 = scmp.ne.s32.totalorder %s20, %s21
    %p32 = scmp.eq.s32.totalorder %s12, 0
    %p33 = por %p31, %p32
    %p34 = scmp.ne.s32.totalorder %s20, %s21
    %p35 = scmp.eq.s32.totalorder %s13, 1
    %p36 = por %p34, %p35
    %p38 = scmp.ne.s32.totalorder %s21, %s37
    %p39 = scmp.eq.s32.totalorder %s13, 0
    %p40 = por %p38, %p39
    %s41 = ssub.s32 %s7, %s14
    %p42 = scmp.eq.s32.totalorder %s41, 0
    %s44 = sadd.s32 %s43, 1
    %s45 = scalar_select %p42, %s43, %s44
    %p48 = pneg %p42
    %p49 = scmp.eq.s32.totalorder %s7, 1
    %p50 = por %p48, %p49
    %p51 = scmp.ne.s32.totalorder %s43, %s46
    %p52 = scmp.eq.s32.totalorder %s7, 0
    %p53 = por %p51, %p52
    %p54 = scmp.ne.s32.totalorder %s43, %s46
    %p55 = scmp.eq.s32.totalorder %s12, 1
    %p56 = por %p54, %p55
    %p57 = scmp.ne.s32.totalorder %s46, %s47
    %p58 = scmp.eq.s32.totalorder %s12, 0
    %p59 = por %p57, %p58
    %p60 = scmp.ne.s32.totalorder %s46, %s47
    %p61 = scmp.eq.s32.totalorder %s13, 1
    %p62 = por %p60, %p61
    %p64 = scmp.ne.s32.totalorder %s47, %s63
    %p65 = scmp.eq.s32.totalorder %s13, 0
    %p66 = por %p64, %p65
    %p67 = scmp.le.s32.totalorder 1, %s7
    %p68 = scmp.lt.s32.totalorder %s7, 3
    %p69 = pnand %p67, %p68
    %p70 = pneg %p69
    // Predicated region
    $region9: #{gpt_forward.12} parent=5 // pred_check
      _
    $region10: #{gpt_forward.12} parent=5 // pred_check_branch
      %72 = sbr.rel (%p69) target = $region12
    $region11: #{gpt_forward.12} parent=5 // pred_region
      %s73 = ssub.s32 %s7, 1
    $region12: #{gpt_forward.12} parent=5 // pred_fallthru
      _
    %p74 = scmp.lt.s32.totalorder %s7, 2
    // Predicated region
    $region13: #{gpt_forward.12} parent=5 // pred_check
      %p75 = pneg %p74
    $region14: #{gpt_forward.12} parent=5 // pred_check_branch
      %77 = sbr.rel (%p75) target = $region16
    $region15: #{gpt_forward.12} parent=5 // pred_region
      // Predicated region
      $region17: #{gpt_forward.12} parent=15 // pred_check
        %p78 = pneg %p27
      $region18: #{gpt_forward.12} parent=15 // pred_check_branch
        %80 = sbr.rel (%p78) target = $region20
      $region19: #{gpt_forward.12} parent=15 // pred_region
        %p81 = scmp.lt.s32.totalorder %s7, 1
        %s82 = scalar_select %p81, %s7, 1
        %s83 = smul.addr %s82, 2
        %s84 = smul.addr %s83, 8
        %s85 = scalar_lea.vmem %s0, %s84
      $region20: #{gpt_forward.12} parent=15 // pred_fallthru
        _
    $region16: #{gpt_forward.12} parent=5 // pred_fallthru
      _
    %p86 = scmp.le.s32.totalorder 1, %s7
    %p87 = scmp.lt.s32.totalorder %s7, 3
    %p88 = pnand %p86, %p87
    %p89 = pneg %p88
    // Predicated region
    $region21: #{gpt_forward.12} parent=5 // pred_check
      _
    $region22: #{gpt_forward.12} parent=5 // pred_check_branch
      %91 = sbr.rel (%p88) target = $region24
    $region23: #{gpt_forward.12} parent=5 // pred_region
      %s92 = ssub.s32 %s7, 1
      %p93 = scmp.lt.s32.totalorder %s12, 1
      %s94 = scalar_select %p93, %s12, 1
      %s95 = smul.addr %s94, 2
      %s96 = smul.addr %s95, 8
      %s97 = scalar_lea.vmem %s0, %s96
      %p98 = pneg %p33
      %p99 = pneg %p30
      %p100 = pneg %p59
      %p101 = pneg %p56
      %p102 = scmp.lt.s32.totalorder %s12, 1
      %s103 = scalar_select %p102, %s12, 1
      %s104 = smul.addr %s103, 8
      %s105 = scalar_lea.vmem %s1, %s104
      %p106 = scmp.lt.s32.totalorder %s12, 1
      %s107 = scalar_select %p106, %s12, 1
      %s108 = smul.addr %s107, 2
      %s109 = smul.addr %s108, 8
      %s110 = scalar_lea.vmem %s0, %s109
      %p111 = scmp.lt.s32.totalorder %s12, 1
      %s112 = scalar_select %p111, %s12, 1
      %s113 = smul.addr %s112, 8
      %s114 = scalar_lea.vmem %s1, %s113
      %v115 = vlaneseq
      %v116 = vshrl.u32 %v115, 7
      %v117 = vlaneseq
      %v118 = vand.u32 %v117, 127
      %vm119 = vcmp.ge.s32.totalorder %v116, %v118
      %v120 = vld [vmem:[%s110] sm:$0xff]
      %v121 = vmul.f32 %v120, 0.17677669
      %v122 = vld [vmem:[%s110 + $0x8] sm:$0xff]
      %124 = vrot.lane.b32.xlu0 %v120, 64
      %v125 = vpop.permute.xlu0 %124
      %vm126 = vcmask 261120
      %v128 = vsel %vm126, %v121, 0
      %v130 = vsel %vm126, %v125, 0
      %132 = vmatpush.xpose.msra.mxu0 0.0
      %133 = vmatpush.xpose.msra.mxu0 0.0
      %134 = vmatpush.xpose.msra.mxu0 0.0
      %135 = vmatpush.xpose.msra.mxu0 0.0
      %136 = vmatpush.xpose.msra.mxu0 0.0
      %137 = vmatpush.xpose.msra.mxu0 0.0
      %138 = vmatpush.xpose.msra.mxu0 0.0
      %139 = vmatpush.xpose.msra.mxu0 0.0
      %140 = vmatpush.xpose.msra.mxu0 0.0
      %141 = vmatpush.xpose.msra.mxu0 0.0
      %142 = vmatpush.xpose.msra.mxu0 0.0
      %143 = vmatpush.xpose.msra.mxu0 0.0
      %144 = vmatpush.xpose.msra.mxu0 0.0
      %145 = vmatpush.xpose.msra.mxu0 0.0
      %146 = vmatpush.xpose.msra.mxu0 0.0
      %147 = vmatpush.xpose.msra.mxu0 %v130
      %148 = vmatmul.f32.gmra.mxu0 %v128
      %v149 = vpop.f32.mrf.mxu0
      %v150 = vadd.f32 0.0, %v149
      %151 = vdwg.mxu0
      %v152 = vsel %vm119, %v150, -1e+30
      %vm153 = vcmask 64512
      %v154 = vsel %vm153, %v152, -inf
      %155 = vmax.xlane.f32.xlu0 %v154
      %v156 = vpop.xlane.xlu0 %155
      %v157 = vsub.f32 %v152, %v156
      %v158 = vmul.f32 %v157, 1.442695
      %v159 = vpow.pop %v158
      %v160 = vsel %vm153, %v159, 0.0
      %161 = vadd.xlane.f32.xlu0 %v160
      %v162 = vpop.xlane.xlu0 %161
      %v164 = vsel %vm153, %v159, 0
      %166 = vmatpush.msra.mxu0 0.0
      %167 = vmatpush.msra.mxu0 0.0
      %168 = vmatpush.msra.mxu0 0.0
      %169 = vmatpush.msra.mxu0 0.0
      %170 = vmatpush.msra.mxu0 0.0
      %171 = vmatpush.msra.mxu0 0.0
      %172 = vmatpush.msra.mxu0 0.0
      %173 = vmatpush.msra.mxu0 0.0
      %174 = vmatpush.msra.mxu0 0.0
      %175 = vmatpush.msra.mxu0 0.0
      %176 = vmatpush.msra.mxu0 0.0
      %177 = vmatpush.msra.mxu0 0.0
      %178 = vmatpush.msra.mxu0 0.0
      %179 = vmatpush.msra.mxu0 0.0
      %180 = vmatpush.msra.mxu0 0.0
      %181 = vmatpush.msra.mxu0 %v122
      %182 = vmatmul.f32.gmra.mxu0 %v164
      %v183 = vpop.f32.mrf.mxu0
      %v184 = vadd.f32 0.0, %v183
      %185 = vdwg.mxu0
      %v186 = vrcp.pop %v162
      %v187 = vmul.f32 %v184, %v186
      %188 = vrot.lane.b32.xlu0 %v121, 96
      %v189 = vpop.permute.xlu0 %188
      %190 = vrot.lane.b32.xlu0 %v120, 32
      %v191 = vpop.permute.xlu0 %190
      %v192 = vsel %vm126, %v189, 0
      %v194 = vsel %vm126, %v191, 0
      %196 = vmatpush.xpose.msra.mxu0 0.0
      %197 = vmatpush.xpose.msra.mxu0 0.0
      %198 = vmatpush.xpose.msra.mxu0 0.0
      %199 = vmatpush.xpose.msra.mxu0 0.0
      %200 = vmatpush.xpose.msra.mxu0 0.0
      %201 = vmatpush.xpose.msra.mxu0 0.0
      %202 = vmatpush.xpose.msra.mxu0 0.0
      %203 = vmatpush.xpose.msra.mxu0 0.0
      %204 = vmatpush.xpose.msra.mxu0 0.0
      %205 = vmatpush.xpose.msra.mxu0 0.0
      %206 = vmatpush.xpose.msra.mxu0 0.0
      %207 = vmatpush.xpose.msra.mxu0 0.0
      %208 = vmatpush.xpose.msra.mxu0 0.0
      %209 = vmatpush.xpose.msra.mxu0 0.0
      %210 = vmatpush.xpose.msra.mxu0 0.0
      %211 = vmatpush.xpose.msra.mxu0 %v194
      %212 = vmatmul.f32.gmra.mxu0 %v192
      %v213 = vpop.f32.mrf.mxu0
      %v214 = vadd.f32 0.0, %v213
      %215 = vdwg.mxu0
      %v216 = vsel %vm119, %v214, -1e+30
      %v217 = vsel %vm153, %v216, -inf
      %218 = vmax.xlane.f32.xlu0 %v217
      %v219 = vpop.xlane.xlu0 %218
      %v220 = vsub.f32 %v216, %v219
      %v221 = vmul.f32 %v220, 1.442695
      %v222 = vpow.pop %v221
      %v223 = vsel %vm153, %v222, 0.0
      %224 = vadd.xlane.f32.xlu0 %v223
      %v225 = vpop.xlane.xlu0 %224
      %227 = vrot.lane.b32.xlu0 %v122, 96
      %v228 = vpop.permute.xlu0 %227
      %v231 = vsel %vm153, %v222, 0
      %233 = vmatpush.msra.mxu0 0.0
      %234 = vmatpush.msra.mxu0 0.0
      %235 = vmatpush.msra.mxu0 0.0
      %236 = vmatpush.msra.mxu0 0.0
      %237 = vmatpush.msra.mxu0 0.0
      %238 = vmatpush.msra.mxu0 0.0
      %239 = vmatpush.msra.mxu0 0.0
      %240 = vmatpush.msra.mxu0 0.0
      %241 = vmatpush.msra.mxu0 0.0
      %242 = vmatpush.msra.mxu0 0.0
      %243 = vmatpush.msra.mxu0 0.0
      %244 = vmatpush.msra.mxu0 0.0
      %245 = vmatpush.msra.mxu0 0.0
      %246 = vmatpush.msra.mxu0 0.0
      %247 = vmatpush.msra.mxu0 0.0
      %248 = vmatpush.msra.mxu0 %v228
      %249 = vmatmul.f32.gmra.mxu0 %v231
      %v250 = vpop.f32.mrf.mxu0
      %v251 = vadd.f32 0.0, %v250
      %252 = vdwg.mxu0
      %v253 = vrcp.pop %v225
      %v254 = vmul.f32 %v251, %v253
      %256 = vrot.lane.b32.xlu0 %v254, 32
      %v257 = vpop.permute.xlu0 %256
      %v259 = vsel %vm126, %v187, %v257
      %vm260 = vcmask 523264
      %261 = vst.msk [vmem:[%s114] sm:$0xff] %vm260, %v259
      %p262 = scmp.lt.s32.totalorder %s12, 1
      %s263 = scalar_select %p262, %s12, 1
      %s264 = smul.addr %s263, 8
      %s265 = scalar_lea.vmem %s1, %s264
      // Predicated region
      $region25: #{gpt_forward.12} parent=23 // pred_check
        %p266 = pneg %p56
      $region26: #{gpt_forward.12} parent=23 // pred_check_branch
        %268 = sbr.rel (%p266) target = $region28
      $region27: #{gpt_forward.12} parent=23 // pred_region
        _
      $region28: #{gpt_forward.12} parent=23 // pred_fallthru
        _
    $region24: #{gpt_forward.12} parent=5 // pred_fallthru
      _
    %p269 = scmp.le.s32.totalorder 2, %s7
    // Predicated region
    $region29: #{gpt_forward.12} parent=5 // pred_check
      %p270 = pneg %p269
    $region30: #{gpt_forward.12} parent=5 // pred_check_branch
      %272 = sbr.rel (%p270) target = $region32
    $region31: #{gpt_forward.12} parent=5 // pred_region
      %s273 = ssub.s32 %s7, 2
      // Predicated region
      $region33: #{gpt_forward.12} parent=31 // pred_check
        %p274 = pneg %p62
      $region34: #{gpt_forward.12} parent=31 // pred_check_branch
        %276 = sbr.rel (%p274) target = $region36
      $region35: #{gpt_forward.12} parent=31 // pred_region
        %p277 = scmp.lt.s32.totalorder %s13, 1
        %s278 = scalar_select %p277, %s13, 1
        %s279 = smul.addr %s278, 8
        %s280 = scalar_lea.vmem %s1, %s279
      $region36: #{gpt_forward.12} parent=31 // pred_fallthru
        _
    $region32: #{gpt_forward.12} parent=5 // pred_fallthru
      _
  $region6: #{gpt_forward.12} parent=0 // loop_footer
    %s11 = sadd.s32 1, %s7
  $region7: #{gpt_forward.12} parent=0 // loop_footer_branch
    %6 = sbr.rel target = $region3
  $region8: #{gpt_forward.12} parent=0 // loop_exit
    _

// kernel: gpt_forward.11
$region0: #{gpt_forward.11}
  #allocation0 [shape = 'u32[]', space=smem, size = 0x4, offset = 0x4, fixed_abs, tag = 'smem constant byte address 0x4 - core index']
  #allocation1 [shape = 'u32[72,128]{1,0:T(1,128)}', space=vmem, size = 0x9000, scoped, tag = 'internal scratch']
  #allocation2 [shape = 'f32[16,256]{1,0:T(8,128)}', space=vmem, size = 0x4000, scoped, tag = 'scratch operand']
  %s0 = inlined_call_operand.vmem [shape: f32[16,64], index: 0, kind: input, shape index: {}]
  %s1 = inlined_call_operand.vmem [shape: f32[64,192], index: 1, kind: input, shape index: {}]
  %s2 = inlined_call_operand.vmem [shape: f32[1,64], index: 2, kind: input, shape index: {}]
  %s3 = inlined_call_operand.vmem [shape: f32[1,64], index: 3, kind: input, shape index: {}]
  %s4 = inlined_call_operand.vmem [shape: f32[16,192], index: 4, kind: output, shape index: {}]
  %s5 = sld [smem:[#allocation0]]
  $region34: #{gpt_forward.11} parent=0
    _
  %s7 = ssub.s32 1, %s5
  %s8 = scalar_select 0, %s7, %s5
  // Predicated region
  $region2: #{gpt_forward.11} parent=0 // pred_check
    _
  $region3: #{gpt_forward.11} parent=0 // pred_check_branch
    %10 = sbr.rel (0) target = $region5
  $region4: #{gpt_forward.11} parent=0 // pred_region
    _
  $region5: #{gpt_forward.11} parent=0 // pred_fallthru
    _
  // Predicated region
  $region6: #{gpt_forward.11} parent=0 // pred_check
    _
  $region7: #{gpt_forward.11} parent=0 // pred_check_branch
    %12 = sbr.rel (0) target = $region9
  $region8: #{gpt_forward.11} parent=0 // pred_region
    _
  $region9: #{gpt_forward.11} parent=0 // pred_fallthru
    _
  // Predicated region
  $region10: #{gpt_forward.11} parent=0 // pred_check
    _
  $region11: #{gpt_forward.11} parent=0 // pred_check_branch
    %14 = sbr.rel (0) target = $region13
  $region12: #{gpt_forward.11} parent=0 // pred_region
    _
  $region13: #{gpt_forward.11} parent=0 // pred_fallthru
    _
  // Predicated region
  $region14: #{gpt_forward.11} parent=0 // pred_check
    _
  $region15: #{gpt_forward.11} parent=0 // pred_check_branch
    %16 = sbr.rel (0) target = $region17
  $region16: #{gpt_forward.11} parent=0 // pred_region
    _
  $region17: #{gpt_forward.11} parent=0 // pred_fallthru
    _
  %p17 = scmp.eq.s32.totalorder 0, 0
  // Predicated region
  $region18: #{gpt_forward.11} parent=0 // pred_check
    %p18 = pneg %p17
  $region19: #{gpt_forward.11} parent=0 // pred_check_branch
    %20 = sbr.rel (%p18) target = $region21
  $region20: #{gpt_forward.11} parent=0 // pred_region
    %21 = vst [vmem:[#allocation2] sm:$0xff] 0.0
    %22 = vst [vmem:[#allocation2 + $0x8] sm:$0xff] 0.0
    %23 = vst [vmem:[#allocation2 + $0x10] sm:$0xff] 0.0
    %24 = vst [vmem:[#allocation2 + $0x18] sm:$0xff] 0.0
  $region21: #{gpt_forward.11} parent=0 // pred_fallthru
    _
  %v25 = vld [vmem:[%s0] sm:$0xff]
  %v26 = vld [vmem:[%s0 + $0x8] sm:$0xff]
  %vm27 = vcmask 523264
  %v28 = vsel %vm27, %v25, 0.0
  %29 = vadd.xlane.f32.xlu0 %v28
  %v30 = vpop.xlane.xlu0 %29
  %v31 = vsel %vm27, %v26, 0.0
  %32 = vadd.xlane.f32.xlu0 %v31
  %v33 = vpop.xlane.xlu0 %32
  %v34 = vmul.f32 %v30, 0.015625
  %v35 = vmul.f32 %v33, 0.015625
  %v36 = vsub.f32 %v25, %v34
  %v37 = vsub.f32 %v26, %v35
  %v38 = vmul.f32 %v36, %v36
  %v39 = vmul.f32 %v37, %v37
  %v40 = vsel %vm27, %v38, 0.0
  %41 = vadd.xlane.f32.xlu0 %v40
  %v42 = vpop.xlane.xlu0 %41
  %v43 = vsel %vm27, %v39, 0.0
  %44 = vadd.xlane.f32.xlu0 %v43
  %v45 = vpop.xlane.xlu0 %44
  %v46 = vmul.f32 %v42, 0.015625
  %v47 = vmul.f32 %v45, 0.015625
  %v48 = vadd.f32 %v46, 1e-05
  %v49 = vadd.f32 %v47, 1e-05
  %v50 = vrsqrt.pop %v48
  %v51 = vmul.f32 %v50, %v48
  %v52 = vmul.f32 %v51, %v50
  %v53 = vmul.f32 0.5, %v52
  %v54 = vsub.f32 1.5, %v53
  %v55 = vmul.f32 %v50, %v54
  %vm56 = vweird.f32 %v48
  %vm57 = vweird.f32 %v50
  %vm58 = vmor %vm56, %vm57
  %v59 = vsel %vm58, %v50, %v55
  %v60 = vrsqrt.pop %v49
  %v61 = vmul.f32 %v60, %v49
  %v62 = vmul.f32 %v61, %v60
  %v63 = vmul.f32 0.5, %v62
  %v64 = vsub.f32 1.5, %v63
  %v65 = vmul.f32 %v60, %v64
  %vm66 = vweird.f32 %v49
  %vm67 = vweird.f32 %v60
  %vm68 = vmor %vm66, %vm67
  %v69 = vsel %vm68, %v60, %v65
  %v70 = vmul.f32 %v36, %v59
  %v71 = vmul.f32 %v37, %v69
  %v72 = vld [vmem:[%s2] sm:$0x1]
  %v74 = vperm.slane %v72, 0
  %v76 = vmul.f32 %v74, %v70
  %v77 = vmul.f32 %v74, %v71
  %v78 = vld [vmem:[%s3] sm:$0x1]
  %v80 = vperm.slane %v78, 0
  %v82 = vadd.f32 %v76, %v80
  %v83 = vadd.f32 %v77, %v80
  %v84 = vld [vmem:[#allocation2] sm:$0xff]
  %v85 = vld [vmem:[#allocation2 + $0x8] sm:$0xff]
  %v86 = vld [vmem:[#allocation2 + $0x10] sm:$0xff]
  %v87 = vld [vmem:[#allocation2 + $0x18] sm:$0xff]
  %v88 = vld [vmem:[%s1] sm:$0xff]
  %v89 = vld [vmem:[%s1 + $0x8] sm:$0xff]
  %v90 = vld [vmem:[%s1 + $0x10] sm:$0xff]
  %v91 = vld [vmem:[%s1 + $0x18] sm:$0xff]
  %v92 = vld [vmem:[%s1 + $0x20] sm:$0xff]
  %v93 = vld [vmem:[%s1 + $0x28] sm:$0xff]
  %v94 = vld [vmem:[%s1 + $0x30] sm:$0xff]
  %v95 = vld [vmem:[%s1 + $0x38] sm:$0xff]
  %v96 = vld [vmem:[%s1 + $0x40] sm:$0xff]
  %v97 = vld [vmem:[%s1 + $0x48] sm:$0xff]
  %v98 = vld [vmem:[%s1 + $0x50] sm:$0xff]
  %v99 = vld [vmem:[%s1 + $0x58] sm:$0xff]
  %v100 = vld [vmem:[%s1 + $0x60] sm:$0xff]
  %v101 = vld [vmem:[%s1 + $0x68] sm:$0xff]
  %v102 = vld [vmem:[%s1 + $0x70] sm:$0xff]
  %v103 = vld [vmem:[%s1 + $0x78] sm:$0xff]
  %v105 = vsel %vm27, %v82, 0
  %v108 = vsel %vm27, %v83, 0
  %110 = vmatpush.msra.mxu0 0.0
  %111 = vmatpush.msra.mxu0 0.0
  %112 = vmatpush.msra.mxu0 0.0
  %113 = vmatpush.msra.mxu0 0.0
  %114 = vmatpush.msra.mxu0 0.0
  %115 = vmatpush.msra.mxu0 0.0
  %116 = vmatpush.msra.mxu0 0.0
  %117 = vmatpush.msra.mxu0 0.0
  %118 = vmatpush.msra.mxu0 %v102
  %119 = vmatpush.msra.mxu0 %v100
  %120 = vmatpush.msra.mxu0 %v98
  %121 = vmatpush.msra.mxu0 %v96
  %122 = vmatpush.msra.mxu0 %v94
  %123 = vmatpush.msra.mxu0 %v92
  %124 = vmatpush.msra.mxu0 %v90
  %125 = vmatpush.msra.mxu0 %v88
  %126 = vmatmul.f32.gmra.mxu0 %v105
  %v127 = vpop.f32.mrf.mxu0
  %v128 = vadd.f32 0.0, %v127
  %129 = vmatmul.f32.gmra.mxu0 %v108
  %v130 = vpop.f32.mrf.mxu0
  %v131 = vadd.f32 0.0, %v130
  %132 = vdwg.mxu0
  %133 = vmatpush.msra.mxu0 0.0
  %134 = vmatpush.msra.mxu0 0.0
  %135 = vmatpush.msra.mxu0 0.0
  %136 = vmatpush.msra.mxu0 0.0
  %137 = vmatpush.msra.mxu0 0.0
  %138 = vmatpush.msra.mxu0 0.0
  %139 = vmatpush.msra.mxu0 0.0
  %140 = vmatpush.msra.mxu0 0.0
  %141 = vmatpush.msra.mxu0 %v103
  %142 = vmatpush.msra.mxu0 %v101
  %143 = vmatpush.msra.mxu0 %v99
  %144 = vmatpush.msra.mxu0 %v97
  %145 = vmatpush.msra.mxu0 %v95
  %146 = vmatpush.msra.mxu0 %v93
  %147 = vmatpush.msra.mxu0 %v91
  %148 = vmatpush.msra.mxu0 %v89
  %149 = vmatmul.f32.gmra.mxu0 %v105
  %v150 = vpop.f32.mrf.mxu0
  %v151 = vadd.f32 0.0, %v150
  %152 = vmatmul.f32.gmra.mxu0 %v108
  %v153 = vpop.f32.mrf.mxu0
  %v154 = vadd.f32 0.0, %v153
  %155 = vdwg.mxu0
  %v156 = vadd.f32 %v84, %v128
  %v157 = vadd.f32 %v85, %v151
  %v158 = vadd.f32 %v86, %v131
  %v159 = vadd.f32 %v87, %v154
  %160 = vst [vmem:[#allocation2] sm:$0xff] %v156
  %161 = vst [vmem:[#allocation2 + $0x8] sm:$0xff] %v157
  %162 = vst [vmem:[#allocation2 + $0x10] sm:$0xff] %v158
  %163 = vst [vmem:[#allocation2 + $0x18] sm:$0xff] %v159
  // Predicated region
  $region22: #{gpt_forward.11} parent=0 // pred_check
    %p164 = pneg %p17
  $region23: #{gpt_forward.11} parent=0 // pred_check_branch
    %166 = sbr.rel (%p164) target = $region25
  $region24: #{gpt_forward.11} parent=0 // pred_region
    %v167 = vld [vmem:[#allocation2] sm:$0xff]
    %v168 = vld [vmem:[#allocation2 + $0x8] sm:$0xff]
    %v169 = vld [vmem:[#allocation2 + $0x10] sm:$0xff]
    %v170 = vld [vmem:[#allocation2 + $0x18] sm:$0xff]
    %171 = vst [vmem:[%s4] sm:$0xff] %v167
    %172 = vst [vmem:[%s4 + $0x8] sm:$0xff] %v168
    %173 = vst [vmem:[%s4 + $0x10] sm:$0xff] %v169
    %174 = vst [vmem:[%s4 + $0x18] sm:$0xff] %v170
  $region25: #{gpt_forward.11} parent=0 // pred_fallthru
    _
  // Predicated region
  $region26: #{gpt_forward.11} parent=0 // pred_check
    _
  $region27: #{gpt_forward.11} parent=0 // pred_check_branch
    %176 = sbr.rel (0) target = $region29
  $region28: #{gpt_forward.11} parent=0 // pred_region
    _
  $region29: #{gpt_forward.11} parent=0 // pred_fallthru
    _
  // Predicated region
  $region30: #{gpt_forward.11} parent=0 // pred_check
    _
  $region31: #{gpt_forward.11} parent=0 // pred_check_branch
    %178 = sbr.rel (0) target = $region33
  $region32: #{gpt_forward.11} parent=0 // pred_region
    _
  $region33: #{gpt_forward.11} parent=0 // pred_fallthru
    _

// kernel: gpt_forward.14
$region0: #{gpt_forward.14}
  #allocation0 [shape = 'u32[]', space=smem, size = 0x4, offset = 0x4, fixed_abs, tag = 'smem constant byte address 0x4 - core index']
  #allocation1 [shape = 'u32[72,128]{1,0:T(1,128)}', space=vmem, size = 0x9000, scoped, tag = 'internal scratch']
  #allocation2 [shape = 'f32[16,256]{1,0:T(8,128)}', space=vmem, size = 0x4000, scoped, tag = 'scratch operand']
  %s0 = inlined_call_operand.vmem [shape: f32[16,64], index: 0, kind: input, shape index: {}]
  %s1 = inlined_call_operand.hbm [shape: f32[64,256], index: 1, kind: input, shape index: {}]
  %s2 = inlined_call_operand.vmem [shape: f32[1,64], index: 2, kind: input, shape index: {}]
  %s3 = inlined_call_operand.vmem [shape: f32[1,64], index: 3, kind: input, shape index: {}]
  %s4 = inlined_call_operand.vmem [shape: f32[1,256], index: 4, kind: input, shape index: {}]
  %s5 = inlined_call_operand.vmem [shape: f32[16,256], index: 5, kind: output, shape index: {}]
  %s6 = sld [smem:[#allocation0]]
  $region42: #{gpt_forward.14} parent=0
    _
  %s8 = ssub.s32 1, %s6
  %s9 = scalar_select 0, %s8, %s6
  $region1: #{gpt_forward.14} parent=0
    #allocation3 [shape = 'u8[65536]{0}', space=vmem, size = 0x10000, scoped, tag = 'input window, operand 1, single buffered']
    #allocation4 [shape = 's32[1]{0}', space=sflag, size = 0x4, scoped, tag = 'scoped memory for gpt_forward.14']
    %10 = vsyncpa [#allocation4], 0
    // Predicated region
    $region2: #{gpt_forward.14} parent=1 // pred_check
      _
    $region3: #{gpt_forward.14} parent=1 // pred_check_branch
      %12 = sbr.rel (0) target = $region5
    $region4: #{gpt_forward.14} parent=1 // pred_region
      _
    $region5: #{gpt_forward.14} parent=1 // pred_fallthru
      _
    // Predicated region
    $region6: #{gpt_forward.14} parent=1 // pred_check
      _
    $region7: #{gpt_forward.14} parent=1 // pred_check_branch
      %14 = sbr.rel (0) target = $region9
    $region8: #{gpt_forward.14} parent=1 // pred_region
      %16 = vsyncadd [#allocation4], 0
      %s17 = sshll.u32 %s1, 4
      %s18 = int_to_ptr.hbm [resolvable:$true] %s17
      %s19 = sshll.u32 [#allocation3], 4
      %s20 = int_to_ptr.vmem [resolvable:$true] %s19
      %25 = dma.hbm_to_vmem [thread:$0]  %s18, 2048, %s20, [#allocation4], 256, 256, 16
    $region9: #{gpt_forward.14} parent=1 // pred_fallthru
      _
    // Predicated region
    $region10: #{gpt_forward.14} parent=1 // pred_check
      _
    $region11: #{gpt_forward.14} parent=1 // pred_check_branch
      %27 = sbr.rel (0) target = $region13
    $region12: #{gpt_forward.14} parent=1 // pred_region
      _
    $region13: #{gpt_forward.14} parent=1 // pred_fallthru
      _
    // Predicated region
    $region14: #{gpt_forward.14} parent=1 // pred_check
      _
    $region15: #{gpt_forward.14} parent=1 // pred_check_branch
      %29 = sbr.rel (0) target = $region17
    $region16: #{gpt_forward.14} parent=1 // pred_region
      _
    $region17: #{gpt_forward.14} parent=1 // pred_fallthru
      _
    // Predicated region
    $region18: #{gpt_forward.14} parent=1 // pred_check
      _
    $region19: #{gpt_forward.14} parent=1 // pred_check_branch
      %31 = sbr.rel (0) target = $region21
    $region20: #{gpt_forward.14} parent=1 // pred_region
      _
    $region21: #{gpt_forward.14} parent=1 // pred_fallthru
      _
    // Predicated region
    $region22: #{gpt_forward.14} parent=1 // pred_check
      _
    $region23: #{gpt_forward.14} parent=1 // pred_check_branch
      %33 = sbr.rel (0) target = $region25
    $region24: #{gpt_forward.14} parent=1 // pred_region
      %35 = dma.done [#allocation4], 2048
    $region25: #{gpt_forward.14} parent=1 // pred_fallthru
      _
    %p36 = scmp.eq.s32.totalorder 0, 0
    // Predicated region
    $region26: #{gpt_forward.14} parent=1 // pred_check
      %p37 = pneg %p36
    $region27: #{gpt_forward.14} parent=1 // pred_check_branch
      %39 = sbr.rel (%p37) target = $region29
    $region28: #{gpt_forward.14} parent=1 // pred_region
      %40 = vst [vmem:[#allocation2] sm:$0xff] 0.0
      %41 = vst [vmem:[#allocation2 + $0x8] sm:$0xff] 0.0
      %42 = vst [vmem:[#allocation2 + $0x10] sm:$0xff] 0.0
      %43 = vst [vmem:[#allocation2 + $0x18] sm:$0xff] 0.0
    $region29: #{gpt_forward.14} parent=1 // pred_fallthru
      _
    %v44 = vld [vmem:[%s0] sm:$0xff]
    %v45 = vld [vmem:[%s0 + $0x8] sm:$0xff]
    %vm46 = vcmask 523264
    %v47 = vsel %vm46, %v44, 0.0
    %48 = vadd.xlane.f32.xlu0 %v47
    %v49 = vpop.xlane.xlu0 %48
    %v50 = vsel %vm46, %v45, 0.0
    %51 = vadd.xlane.f32.xlu0 %v50
    %v52 = vpop.xlane.xlu0 %51
    %v53 = vmul.f32 %v49, 0.015625
    %v54 = vmul.f32 %v52, 0.015625
    %v55 = vsub.f32 %v44, %v53
    %v56 = vsub.f32 %v45, %v54
    %v57 = vmul.f32 %v55, %v55
    %v58 = vmul.f32 %v56, %v56
    %v59 = vsel %vm46, %v57, 0.0
    %60 = vadd.xlane.f32.xlu0 %v59
    %v61 = vpop.xlane.xlu0 %60
    %v62 = vsel %vm46, %v58, 0.0
    %63 = vadd.xlane.f32.xlu0 %v62
    %v64 = vpop.xlane.xlu0 %63
    %v65 = vmul.f32 %v61, 0.015625
    %v66 = vmul.f32 %v64, 0.015625
    %v67 = vadd.f32 %v65, 1e-05
    %v68 = vadd.f32 %v66, 1e-05
    %v69 = vrsqrt.pop %v67
    %v70 = vmul.f32 %v69, %v67
    %v71 = vmul.f32 %v70, %v69
    %v72 = vmul.f32 0.5, %v71
    %v73 = vsub.f32 1.5, %v72
    %v74 = vmul.f32 %v69, %v73
    %vm75 = vweird.f32 %v67
    %vm76 = vweird.f32 %v69
    %vm77 = vmor %vm75, %vm76
    %v78 = vsel %vm77, %v69, %v74
    %v79 = vrsqrt.pop %v68
    %v80 = vmul.f32 %v79, %v68
    %v81 = vmul.f32 %v80, %v79
    %v82 = vmul.f32 0.5, %v81
    %v83 = vsub.f32 1.5, %v82
    %v84 = vmul.f32 %v79, %v83
    %vm85 = vweird.f32 %v68
    %vm86 = vweird.f32 %v79
    %vm87 = vmor %vm85, %vm86
    %v88 = vsel %vm87, %v79, %v84
    %v89 = vmul.f32 %v55, %v78
    %v90 = vmul.f32 %v56, %v88
    %v91 = vld [vmem:[%s2] sm:$0x1]
    %v93 = vperm.slane %v91, 0
    %v95 = vmul.f32 %v93, %v89
    %v96 = vmul.f32 %v93, %v90
    %v97 = vld [vmem:[%s3] sm:$0x1]
    %v99 = vperm.slane %v97, 0
    %v101 = vadd.f32 %v95, %v99
    %v102 = vadd.f32 %v96, %v99
    %v103 = vld [vmem:[#allocation2] sm:$0xff]
    %v104 = vld [vmem:[#allocation2 + $0x8] sm:$0xff]
    %v105 = vld [vmem:[#allocation2 + $0x10] sm:$0xff]
    %v106 = vld [vmem:[#allocation2 + $0x18] sm:$0xff]
    %v107 = vld [vmem:[#allocation3] sm:$0xff]
    %v108 = vld [vmem:[#allocation3 + $0x8] sm:$0xff]
    %v109 = vld [vmem:[#allocation3 + $0x10] sm:$0xff]
    %v110 = vld [vmem:[#allocation3 + $0x18] sm:$0xff]
    %v111 = vld [vmem:[#allocation3 + $0x20] sm:$0xff]
    %v112 = vld [vmem:[#allocation3 + $0x28] sm:$0xff]
    %v113 = vld [vmem:[#allocation3 + $0x30] sm:$0xff]
    %v114 = vld [vmem:[#allocation3 + $0x38] sm:$0xff]
    %v115 = vld [vmem:[#allocation3 + $0x40] sm:$0xff]
    %v116 = vld [vmem:[#allocation3 + $0x48] sm:$0xff]
    %v117 = vld [vmem:[#allocation3 + $0x50] sm:$0xff]
    %v118 = vld [vmem:[#allocation3 + $0x58] sm:$0xff]
    %v119 = vld [vmem:[#allocation3 + $0x60] sm:$0xff]
    %v120 = vld [vmem:[#allocation3 + $0x68] sm:$0xff]
    %v121 = vld [vmem:[#allocation3 + $0x70] sm:$0xff]
    %v122 = vld [vmem:[#allocation3 + $0x78] sm:$0xff]
    %v124 = vsel %vm46, %v101, 0
    %v127 = vsel %vm46, %v102, 0
    %129 = vmatpush.msra.mxu0 0.0
    %130 = vmatpush.msra.mxu0 0.0
    %131 = vmatpush.msra.mxu0 0.0
    %132 = vmatpush.msra.mxu0 0.0
    %133 = vmatpush.msra.mxu0 0.0
    %134 = vmatpush.msra.mxu0 0.0
    %135 = vmatpush.msra.mxu0 0.0
    %136 = vmatpush.msra.mxu0 0.0
    %137 = vmatpush.msra.mxu0 %v121
    %138 = vmatpush.msra.mxu0 %v119
    %139 = vmatpush.msra.mxu0 %v117
    %140 = vmatpush.msra.mxu0 %v115
    %141 = vmatpush.msra.mxu0 %v113
    %142 = vmatpush.msra.mxu0 %v111
    %143 = vmatpush.msra.mxu0 %v109
    %144 = vmatpush.msra.mxu0 %v107
    %145 = vmatmul.f32.gmra.mxu0 %v124
    %v146 = vpop.f32.mrf.mxu0
    %v147 = vadd.f32 0.0, %v146
    %148 = vmatmul.f32.gmra.mxu0 %v127
    %v149 = vpop.f32.mrf.mxu0
    %v150 = vadd.f32 0.0, %v149
    %151 = vdwg.mxu0
    %152 = vmatpush.msra.mxu0 0.0
    %153 = vmatpush.msra.mxu0 0.0
    %154 = vmatpush.msra.mxu0 0.0
    %155 = vmatpush.msra.mxu0 0.0
    %156 = vmatpush.msra.mxu0 0.0
    %157 = vmatpush.msra.mxu0 0.0
    %158 = vmatpush.msra.mxu0 0.0
    %159 = vmatpush.msra.mxu0 0.0
    %160 = vmatpush.msra.mxu0 %v122
    %161 = vmatpush.msra.mxu0 %v120
    %162 = vmatpush.msra.mxu0 %v118
    %163 = vmatpush.msra.mxu0 %v116
    %164 = vmatpush.msra.mxu0 %v114
    %165 = vmatpush.msra.mxu0 %v112
    %166 = vmatpush.msra.mxu0 %v110
    %167 = vmatpush.msra.mxu0 %v108
    %168 = vmatmul.f32.gmra.mxu0 %v124
    %v169 = vpop.f32.mrf.mxu0
    %v170 = vadd.f32 0.0, %v169
    %171 = vmatmul.f32.gmra.mxu0 %v127
    %v172 = vpop.f32.mrf.mxu0
    %v173 = vadd.f32 0.0, %v172
    %174 = vdwg.mxu0
    %v175 = vadd.f32 %v103, %v147
    %v176 = vadd.f32 %v104, %v170
    %v177 = vadd.f32 %v105, %v150
    %v178 = vadd.f32 %v106, %v173
    %179 = vst [vmem:[#allocation2] sm:$0xff] %v175
    %180 = vst [vmem:[#allocation2 + $0x8] sm:$0xff] %v176
    %181 = vst [vmem:[#allocation2 + $0x10] sm:$0xff] %v177
    %182 = vst [vmem:[#allocation2 + $0x18] sm:$0xff] %v178
    // Predicated region
    $region30: #{gpt_forward.14} parent=1 // pred_check
      %p183 = pneg %p36
    $region31: #{gpt_forward.14} parent=1 // pred_check_branch
      %185 = sbr.rel (%p183) target = $region33
    $region32: #{gpt_forward.14} parent=1 // pred_region
      %v186 = vld [vmem:[#allocation2] sm:$0xff]
      %v187 = vld [vmem:[#allocation2 + $0x8] sm:$0xff]
      %v188 = vld [vmem:[#allocation2 + $0x10] sm:$0xff]
      %v189 = vld [vmem:[#allocation2 + $0x18] sm:$0xff]
      %v190 = vld [vmem:[%s4] sm:$0x3]
      %v192 = vperm.slane %v190, 0
      %v193 = vperm.slane %v190, 1
      %v196 = vadd.f32 %v186, %v192
      %v197 = vadd.f32 %v187, %v193
      %v198 = vadd.f32 %v188, %v192
      %v199 = vadd.f32 %v189, %v193
      %v200 = vmul.f32 %v196, 0.5
      %v201 = vmul.f32 %v197, 0.5
      %v202 = vmul.f32 %v198, 0.5
      %v203 = vmul.f32 %v199, 0.5
      %v204 = vmul.f32 %v196, 0.044715
      %v205 = vmul.f32 %v197, 0.044715
      %v206 = vmul.f32 %v198, 0.044715
      %v207 = vmul.f32 %v199, 0.044715
      %v208 = vmul.f32 %v204, %v196
      %v209 = vmul.f32 %v205, %v197
      %v210 = vmul.f32 %v206, %v198
      %v211 = vmul.f32 %v207, %v199
      %v212 = vmul.f32 %v208, %v196
      %v213 = vmul.f32 %v209, %v197
      %v214 = vmul.f32 %v210, %v198
      %v215 = vmul.f32 %v211, %v199
      %v216 = vadd.f32 %v196, %v212
      %v217 = vadd.f32 %v197, %v213
      %v218 = vadd.f32 %v198, %v214
      %v219 = vadd.f32 %v199, %v215
      %v220 = vmul.f32 %v216, 0.7978846
      %v221 = vmul.f32 %v217, 0.7978846
      %v222 = vmul.f32 %v218, 0.7978846
      %v223 = vmul.f32 %v219, 0.7978846
      %v224 = vtanh.pop %v220
      %v225 = vtanh.pop %v221
      %v226 = vtanh.pop %v222
      %v227 = vtanh.pop %v223
      %v228 = vadd.f32 %v224, 1.0
      %v229 = vadd.f32 %v225, 1.0
      %v230 = vadd.f32 %v226, 1.0
      %v231 = vadd.f32 %v227, 1.0
      %v232 = vmul.f32 %v200, %v228
      %v233 = vmul.f32 %v201, %v229
      %v234 = vmul.f32 %v202, %v230
      %v235 = vmul.f32 %v203, %v231
      %236 = vst [vmem:[%s5] sm:$0xff] %v232
      %237 = vst [vmem:[%s5 + $0x8] sm:$0xff] %v233
      %238 = vst [vmem:[%s5 + $0x10] sm:$0xff] %v234
      %239 = vst [vmem:[%s5 + $0x18] sm:$0xff] %v235
    $region33: #{gpt_forward.14} parent=1 // pred_fallthru
      _
    // Predicated region
    $region34: #{gpt_forward.14} parent=1 // pred_check
      _
    $region35: #{gpt_forward.14} parent=1 // pred_check_branch
      %241 = sbr.rel (0) target = $region37
    $region36: #{gpt_forward.14} parent=1 // pred_region
      _
    $region37: #{gpt_forward.14} parent=1 // pred_fallthru
      _
    // Predicated region
    $region38: #{gpt_forward.14} parent=1 // pred_check
      _
    $region39: #{gpt_forward.14} parent=1 // pred_check_branch
      %243 = sbr.rel (0) target = $region41
    $region40: #{gpt_forward.14} parent=1 // pred_region
      _
    $region41: #{gpt_forward.14} parent=1 // pred_fallthru
      _
    %244 = vsyncpa [#allocation4], 1

// kernel: gpt_forward.21
$region0: #{gpt_forward.21}
  #allocation0 [shape = 'u32[]', space=smem, size = 0x4, offset = 0x4, fixed_abs, tag = 'smem constant byte address 0x4 - core index']
  #allocation1 [shape = 'u32[72,128]{1,0:T(1,128)}', space=vmem, size = 0x9000, scoped, tag = 'internal scratch']
  #allocation2 [shape = 'f32[16,128]{1,0:T(8,128)}', space=vmem, size = 0x2000, scoped, tag = 'scratch operand']
  %s0 = inlined_call_operand.vmem [shape: f32[16,64], index: 0, kind: input, shape index: {}]
  %s1 = inlined_call_operand.vmem [shape: f32[64,97], index: 1, kind: input, shape index: {}]
  %s2 = inlined_call_operand.vmem [shape: f32[1,64], index: 2, kind: input, shape index: {}]
  %s3 = inlined_call_operand.vmem [shape: f32[1,64], index: 3, kind: input, shape index: {}]
  %s4 = inlined_call_operand.hbm [shape: f32[16,97], index: 4, kind: output, shape index: {}]
  %s5 = sld [smem:[#allocation0]]
  $region34: #{gpt_forward.21} parent=0
    _
  %s7 = ssub.s32 1, %s5
  %s8 = scalar_select 0, %s7, %s5
  $region1: #{gpt_forward.21} parent=0
    #allocation3 [shape = 'u8[8192]{0}', space=vmem, size = 0x2000, scoped, tag = 'output window, operand 0, single buffered']
    #allocation4 [shape = 's32[1]{0}', space=sflag, size = 0x4, scoped, tag = 'scoped memory for gpt_forward.21']
    %9 = vsyncpa [#allocation4], 0
    // Predicated region
    $region2: #{gpt_forward.21} parent=1 // pred_check
      _
    $region3: #{gpt_forward.21} parent=1 // pred_check_branch
      %11 = sbr.rel (0) target = $region5
    $region4: #{gpt_forward.21} parent=1 // pred_region
      _
    $region5: #{gpt_forward.21} parent=1 // pred_fallthru
      _
    // Predicated region
    $region6: #{gpt_forward.21} parent=1 // pred_check
      _
    $region7: #{gpt_forward.21} parent=1 // pred_check_branch
      %13 = sbr.rel (0) target = $region9
    $region8: #{gpt_forward.21} parent=1 // pred_region
      _
    $region9: #{gpt_forward.21} parent=1 // pred_fallthru
      _
    // Predicated region
    $region10: #{gpt_forward.21} parent=1 // pred_check
      _
    $region11: #{gpt_forward.21} parent=1 // pred_check_branch
      %15 = sbr.rel (0) target = $region13
    $region12: #{gpt_forward.21} parent=1 // pred_region
      _
    $region13: #{gpt_forward.21} parent=1 // pred_fallthru
      _
    // Predicated region
    $region14: #{gpt_forward.21} parent=1 // pred_check
      _
    $region15: #{gpt_forward.21} parent=1 // pred_check_branch
      %17 = sbr.rel (0) target = $region17
    $region16: #{gpt_forward.21} parent=1 // pred_region
      _
    $region17: #{gpt_forward.21} parent=1 // pred_fallthru
      _
    %p18 = scmp.eq.s32.totalorder 0, 0
    // Predicated region
    $region18: #{gpt_forward.21} parent=1 // pred_check
      %p19 = pneg %p18
    $region19: #{gpt_forward.21} parent=1 // pred_check_branch
      %21 = sbr.rel (%p19) target = $region21
    $region20: #{gpt_forward.21} parent=1 // pred_region
      %22 = vst [vmem:[#allocation2] sm:$0xff] 0.0
      %23 = vst [vmem:[#allocation2 + $0x8] sm:$0xff] 0.0
    $region21: #{gpt_forward.21} parent=1 // pred_fallthru
      _
    %v24 = vld [vmem:[%s0] sm:$0xff]
    %v25 = vld [vmem:[%s0 + $0x8] sm:$0xff]
    %vm26 = vcmask 523264
    %v27 = vsel %vm26, %v24, 0.0
    %28 = vadd.xlane.f32.xlu0 %v27
    %v29 = vpop.xlane.xlu0 %28
    %v30 = vsel %vm26, %v25, 0.0
    %31 = vadd.xlane.f32.xlu0 %v30
    %v32 = vpop.xlane.xlu0 %31
    %v33 = vmul.f32 %v29, 0.015625
    %v34 = vmul.f32 %v32, 0.015625
    %v35 = vsub.f32 %v24, %v33
    %v36 = vsub.f32 %v25, %v34
    %v37 = vmul.f32 %v35, %v35
    %v38 = vmul.f32 %v36, %v36
    %v39 = vsel %vm26, %v37, 0.0
    %40 = vadd.xlane.f32.xlu0 %v39
    %v41 = vpop.xlane.xlu0 %40
    %v42 = vsel %vm26, %v38, 0.0
    %43 = vadd.xlane.f32.xlu0 %v42
    %v44 = vpop.xlane.xlu0 %43
    %v45 = vmul.f32 %v41, 0.015625
    %v46 = vmul.f32 %v44, 0.015625
    %v47 = vadd.f32 %v45, 1e-05
    %v48 = vadd.f32 %v46, 1e-05
    %v49 = vrsqrt.pop %v47
    %v50 = vmul.f32 %v49, %v47
    %v51 = vmul.f32 %v50, %v49
    %v52 = vmul.f32 0.5, %v51
    %v53 = vsub.f32 1.5, %v52
    %v54 = vmul.f32 %v49, %v53
    %vm55 = vweird.f32 %v47
    %vm56 = vweird.f32 %v49
    %vm57 = vmor %vm55, %vm56
    %v58 = vsel %vm57, %v49, %v54
    %v59 = vrsqrt.pop %v48
    %v60 = vmul.f32 %v59, %v48
    %v61 = vmul.f32 %v60, %v59
    %v62 = vmul.f32 0.5, %v61
    %v63 = vsub.f32 1.5, %v62
    %v64 = vmul.f32 %v59, %v63
    %vm65 = vweird.f32 %v48
    %vm66 = vweird.f32 %v59
    %vm67 = vmor %vm65, %vm66
    %v68 = vsel %vm67, %v59, %v64
    %v69 = vmul.f32 %v35, %v58
    %v70 = vmul.f32 %v36, %v68
    %v71 = vld [vmem:[%s2] sm:$0x1]
    %v73 = vperm.slane %v71, 0
    %v75 = vmul.f32 %v73, %v69
    %v76 = vmul.f32 %v73, %v70
    %v77 = vld [vmem:[%s3] sm:$0x1]
    %v79 = vperm.slane %v77, 0
    %v81 = vadd.f32 %v75, %v79
    %v82 = vadd.f32 %v76, %v79
    %v83 = vld [vmem:[#allocation2] sm:$0xff]
    %v84 = vld [vmem:[#allocation2 + $0x8] sm:$0xff]
    %v85 = vld [vmem:[%s1] sm:$0xff]
    %v86 = vld [vmem:[%s1 + $0x8] sm:$0xff]
    %v87 = vld [vmem:[%s1 + $0x10] sm:$0xff]
    %v88 = vld [vmem:[%s1 + $0x18] sm:$0xff]
    %v89 = vld [vmem:[%s1 + $0x20] sm:$0xff]
    %v90 = vld [vmem:[%s1 + $0x28] sm:$0xff]
    %v91 = vld [vmem:[%s1 + $0x30] sm:$0xff]
    %v92 = vld [vmem:[%s1 + $0x38] sm:$0xff]
    %v94 = vsel %vm26, %v81, 0
    %v97 = vsel %vm26, %v82, 0
    %99 = vmatpush.msra.mxu0 0.0
    %100 = vmatpush.msra.mxu0 0.0
    %101 = vmatpush.msra.mxu0 0.0
    %102 = vmatpush.msra.mxu0 0.0
    %103 = vmatpush.msra.mxu0 0.0
    %104 = vmatpush.msra.mxu0 0.0
    %105 = vmatpush.msra.mxu0 0.0
    %106 = vmatpush.msra.mxu0 0.0
    %107 = vmatpush.msra.mxu0 %v92
    %108 = vmatpush.msra.mxu0 %v91
    %109 = vmatpush.msra.mxu0 %v90
    %110 = vmatpush.msra.mxu0 %v89
    %111 = vmatpush.msra.mxu0 %v88
    %112 = vmatpush.msra.mxu0 %v87
    %113 = vmatpush.msra.mxu0 %v86
    %114 = vmatpush.msra.mxu0 %v85
    %115 = vmatmul.f32.gmra.mxu0 %v94
    %v116 = vpop.f32.mrf.mxu0
    %v117 = vadd.f32 0.0, %v116
    %118 = vmatmul.f32.gmra.mxu0 %v97
    %v119 = vpop.f32.mrf.mxu0
    %v120 = vadd.f32 0.0, %v119
    %121 = vdwg.mxu0
    %v122 = vadd.f32 %v83, %v117
    %v123 = vadd.f32 %v84, %v120
    %124 = vst [vmem:[#allocation2] sm:$0xff] %v122
    %125 = vst [vmem:[#allocation2 + $0x8] sm:$0xff] %v123
    // Predicated region
    $region22: #{gpt_forward.21} parent=1 // pred_check
      %p126 = pneg %p18
    $region23: #{gpt_forward.21} parent=1 // pred_check_branch
      %128 = sbr.rel (%p126) target = $region25
    $region24: #{gpt_forward.21} parent=1 // pred_region
      %v129 = vld [vmem:[#allocation2] sm:$0xff]
      %v130 = vld [vmem:[#allocation2 + $0x8] sm:$0xff]
      %131 = vst [vmem:[#allocation3] sm:$0xff] %v129
      %132 = vst [vmem:[#allocation3 + $0x8] sm:$0xff] %v130
    $region25: #{gpt_forward.21} parent=1 // pred_fallthru
      _
    // Predicated region
    $region26: #{gpt_forward.21} parent=1 // pred_check
      _
    $region27: #{gpt_forward.21} parent=1 // pred_check_branch
      %134 = sbr.rel (0) target = $region29
    $region28: #{gpt_forward.21} parent=1 // pred_region
      %136 = vsyncadd [#allocation4], 0
      %s137 = sshll.u32 [#allocation3], 4
      %s138 = int_to_ptr.vmem [resolvable:$true] %s137
      %s139 = sshll.u32 %s4, 4
      %s140 = int_to_ptr.hbm [resolvable:$true] %s139
      %145 = dma.vmem_to_hbm [thread:$0]  %s138, 256, %s140, [#allocation4], 128, 128, 8
    $region29: #{gpt_forward.21} parent=1 // pred_fallthru
      _
    // Predicated region
    $region30: #{gpt_forward.21} parent=1 // pred_check
      _
    $region31: #{gpt_forward.21} parent=1 // pred_check_branch
      %147 = sbr.rel (0) target = $region33
    $region32: #{gpt_forward.21} parent=1 // pred_region
      %149 = dma.done [#allocation4], 256
    $region33: #{gpt_forward.21} parent=1 // pred_fallthru
      _
    %150 = vsyncpa [#allocation4], 1

// kernel: gpt_forward.15
$region0: #{gpt_forward.15}
  #allocation0 [shape = 'u32[]', space=smem, size = 0x4, offset = 0x4, fixed_abs, tag = 'smem constant byte address 0x4 - core index']
  #allocation1 [shape = 'u32[72,128]{1,0:T(1,128)}', space=vmem, size = 0x9000, scoped, tag = 'internal scratch']
  #allocation2 [shape = 'f32[16,128]{1,0:T(8,128)}', space=vmem, size = 0x2000, scoped, tag = 'scratch operand']
  %s0 = inlined_call_operand.vmem [shape: f32[16,256], index: 0, kind: input, shape index: {}]
  %s1 = inlined_call_operand.vmem [shape: f32[256,64], index: 1, kind: input, shape index: {}]
  %s2 = inlined_call_operand.vmem [shape: f32[1,64], index: 2, kind: input, shape index: {}]
  %s3 = inlined_call_operand.vmem [shape: f32[16,64], index: 3, kind: input, shape index: {}]
  %s4 = inlined_call_operand.vmem [shape: f32[16,64], index: 4, kind: output, shape index: {}]
  %s5 = sld [smem:[#allocation0]]
  $region34: #{gpt_forward.15} parent=0
    _
  %s7 = ssub.s32 1, %s5
  %s8 = scalar_select 0, %s7, %s5
  // Predicated region
  $region2: #{gpt_forward.15} parent=0 // pred_check
    _
  $region3: #{gpt_forward.15} parent=0 // pred_check_branch
    %10 = sbr.rel (0) target = $region5
  $region4: #{gpt_forward.15} parent=0 // pred_region
    _
  $region5: #{gpt_forward.15} parent=0 // pred_fallthru
    _
  // Predicated region
  $region6: #{gpt_forward.15} parent=0 // pred_check
    _
  $region7: #{gpt_forward.15} parent=0 // pred_check_branch
    %12 = sbr.rel (0) target = $region9
  $region8: #{gpt_forward.15} parent=0 // pred_region
    _
  $region9: #{gpt_forward.15} parent=0 // pred_fallthru
    _
  // Predicated region
  $region10: #{gpt_forward.15} parent=0 // pred_check
    _
  $region11: #{gpt_forward.15} parent=0 // pred_check_branch
    %14 = sbr.rel (0) target = $region13
  $region12: #{gpt_forward.15} parent=0 // pred_region
    _
  $region13: #{gpt_forward.15} parent=0 // pred_fallthru
    _
  // Predicated region
  $region14: #{gpt_forward.15} parent=0 // pred_check
    _
  $region15: #{gpt_forward.15} parent=0 // pred_check_branch
    %16 = sbr.rel (0) target = $region17
  $region16: #{gpt_forward.15} parent=0 // pred_region
    _
  $region17: #{gpt_forward.15} parent=0 // pred_fallthru
    _
  %p17 = scmp.eq.s32.totalorder 0, 0
  // Predicated region
  $region18: #{gpt_forward.15} parent=0 // pred_check
    %p18 = pneg %p17
  $region19: #{gpt_forward.15} parent=0 // pred_check_branch
    %20 = sbr.rel (%p18) target = $region21
  $region20: #{gpt_forward.15} parent=0 // pred_region
    %21 = vst [vmem:[#allocation2] sm:$0xff] 0.0
    %22 = vst [vmem:[#allocation2 + $0x8] sm:$0xff] 0.0
  $region21: #{gpt_forward.15} parent=0 // pred_fallthru
    _
  %v23 = vld [vmem:[%s0] sm:$0xff]
  %v24 = vld [vmem:[%s0 + $0x8] sm:$0xff]
  %v25 = vld [vmem:[%s0 + $0x10] sm:$0xff]
  %v26 = vld [vmem:[%s0 + $0x18] sm:$0xff]
  %v27 = vld [vmem:[#allocation2] sm:$0xff]
  %v28 = vld [vmem:[#allocation2 + $0x8] sm:$0xff]
  %v29 = vld [vmem:[%s1] sm:$0xff]
  %v30 = vld [vmem:[%s1 + $0x8] sm:$0xff]
  %v31 = vld [vmem:[%s1 + $0x10] sm:$0xff]
  %v32 = vld [vmem:[%s1 + $0x18] sm:$0xff]
  %v33 = vld [vmem:[%s1 + $0x20] sm:$0xff]
  %v34 = vld [vmem:[%s1 + $0x28] sm:$0xff]
  %v35 = vld [vmem:[%s1 + $0x30] sm:$0xff]
  %v36 = vld [vmem:[%s1 + $0x38] sm:$0xff]
  %v37 = vld [vmem:[%s1 + $0x40] sm:$0xff]
  %v38 = vld [vmem:[%s1 + $0x48] sm:$0xff]
  %v39 = vld [vmem:[%s1 + $0x50] sm:$0xff]
  %v40 = vld [vmem:[%s1 + $0x58] sm:$0xff]
  %v41 = vld [vmem:[%s1 + $0x60] sm:$0xff]
  %v42 = vld [vmem:[%s1 + $0x68] sm:$0xff]
  %v43 = vld [vmem:[%s1 + $0x70] sm:$0xff]
  %v44 = vld [vmem:[%s1 + $0x78] sm:$0xff]
  %v45 = vld [vmem:[%s1 + $0x80] sm:$0xff]
  %v46 = vld [vmem:[%s1 + $0x88] sm:$0xff]
  %v47 = vld [vmem:[%s1 + $0x90] sm:$0xff]
  %v48 = vld [vmem:[%s1 + $0x98] sm:$0xff]
  %v49 = vld [vmem:[%s1 + $0xa0] sm:$0xff]
  %v50 = vld [vmem:[%s1 + $0xa8] sm:$0xff]
  %v51 = vld [vmem:[%s1 + $0xb0] sm:$0xff]
  %v52 = vld [vmem:[%s1 + $0xb8] sm:$0xff]
  %v53 = vld [vmem:[%s1 + $0xc0] sm:$0xff]
  %v54 = vld [vmem:[%s1 + $0xc8] sm:$0xff]
  %v55 = vld [vmem:[%s1 + $0xd0] sm:$0xff]
  %v56 = vld [vmem:[%s1 + $0xd8] sm:$0xff]
  %v57 = vld [vmem:[%s1 + $0xe0] sm:$0xff]
  %v58 = vld [vmem:[%s1 + $0xe8] sm:$0xff]
  %v59 = vld [vmem:[%s1 + $0xf0] sm:$0xff]
  %v60 = vld [vmem:[%s1 + $0xf8] sm:$0xff]
  %61 = vmatpush.msra.mxu0 %v44
  %62 = vmatpush.msra.mxu0 %v43
  %63 = vmatpush.msra.mxu0 %v42
  %64 = vmatpush.msra.mxu0 %v41
  %65 = vmatpush.msra.mxu0 %v40
  %66 = vmatpush.msra.mxu0 %v39
  %67 = vmatpush.msra.mxu0 %v38
  %68 = vmatpush.msra.mxu0 %v37
  %69 = vmatpush.msra.mxu0 %v36
  %70 = vmatpush.msra.mxu0 %v35
  %71 = vmatpush.msra.mxu0 %v34
  %72 = vmatpush.msra.mxu0 %v33
  %73 = vmatpush.msra.mxu0 %v32
  %74 = vmatpush.msra.mxu0 %v31
  %75 = vmatpush.msra.mxu0 %v30
  %76 = vmatpush.msra.mxu0 %v29
  %77 = vmatmul.f32.gmra.mxu0 %v23
  %v78 = vpop.f32.mrf.mxu0
  %v79 = vadd.f32 0.0, %v78
  %80 = vmatmul.f32.gmra.mxu0 %v25
  %v81 = vpop.f32.mrf.mxu0
  %v82 = vadd.f32 0.0, %v81
  %83 = vdwg.mxu0
  %84 = vmatpush.msra.mxu0 %v60
  %85 = vmatpush.msra.mxu0 %v59
  %86 = vmatpush.msra.mxu0 %v58
  %87 = vmatpush.msra.mxu0 %v57
  %88 = vmatpush.msra.mxu0 %v56
  %89 = vmatpush.msra.mxu0 %v55
  %90 = vmatpush.msra.mxu0 %v54
  %91 = vmatpush.msra.mxu0 %v53
  %92 = vmatpush.msra.mxu0 %v52
  %93 = vmatpush.msra.mxu0 %v51
  %94 = vmatpush.msra.mxu0 %v50
  %95 = vmatpush.msra.mxu0 %v49
  %96 = vmatpush.msra.mxu0 %v48
  %97 = vmatpush.msra.mxu0 %v47
  %98 = vmatpush.msra.mxu0 %v46
  %99 = vmatpush.msra.mxu0 %v45
  %100 = vmatmul.f32.gmra.mxu0 %v24
  %v101 = vpop.f32.mrf.mxu0
  %v102 = vadd.f32 %v79, %v101
  %103 = vmatmul.f32.gmra.mxu0 %v26
  %v104 = vpop.f32.mrf.mxu0
  %v105 = vadd.f32 %v82, %v104
  %106 = vdwg.mxu0
  %v107 = vadd.f32 %v27, %v102
  %v108 = vadd.f32 %v28, %v105
  %109 = vst [vmem:[#allocation2] sm:$0xff] %v107
  %110 = vst [vmem:[#allocation2 + $0x8] sm:$0xff] %v108
  // Predicated region
  $region22: #{gpt_forward.15} parent=0 // pred_check
    %p111 = pneg %p17
  $region23: #{gpt_forward.15} parent=0 // pred_check_branch
    %113 = sbr.rel (%p111) target = $region25
  $region24: #{gpt_forward.15} parent=0 // pred_region
    %v114 = vld [vmem:[#allocation2] sm:$0xff]
    %v115 = vld [vmem:[#allocation2 + $0x8] sm:$0xff]
    %v116 = vld [vmem:[%s2] sm:$0x1]
    %v118 = vperm.slane %v116, 0
    %v120 = vadd.f32 %v114, %v118
    %v121 = vadd.f32 %v115, %v118
    %v122 = vld [vmem:[%s3] sm:$0xff]
    %v123 = vld [vmem:[%s3 + $0x8] sm:$0xff]
    %v124 = vadd.f32 %v120, %v122
    %v125 = vadd.f32 %v121, %v123
    %126 = vst [vmem:[%s4] sm:$0xff] %v124
    %127 = vst [vmem:[%s4 + $0x8] sm:$0xff] %v125
  $region25: #{gpt_forward.15} parent=0 // pred_fallthru
    _
  // Predicated region
  $region26: #{gpt_forward.15} parent=0 // pred_check
    _
  $region27: #{gpt_forward.15} parent=0 // pred_check_branch
    %129 = sbr.rel (0) target = $region29
  $region28: #{gpt_forward.15} parent=0 // pred_region
    _
  $region29: #{gpt_forward.15} parent=0 // pred_fallthru
    _
  // Predicated region
  $region30: #{gpt_forward.15} parent=0 // pred_check
    _
  $region31: #{gpt_forward.15} parent=0 // pred_check_branch
    %131 = sbr.rel (0) target = $region33
  $region32: #{gpt_forward.15} parent=0 // pred_region
    _
  $region33: #{gpt_forward.15} parent=0 // pred_fallthru
    _

// kernel: gpt_forward.19
$region0: #{gpt_forward.19}
  #allocation0 [shape = 'u32[]', space=smem, size = 0x4, offset = 0x4, fixed_abs, tag = 'smem constant byte address 0x4 - core index']
  #allocation1 [shape = 'u32[72,128]{1,0:T(1,128)}', space=vmem, size = 0x9000, scoped, tag = 'internal scratch']
  #allocation2 [shape = 'f32[16,256]{1,0:T(8,128)}', space=vmem, size = 0x4000, scoped, tag = 'scratch operand']
  %s0 = inlined_call_operand.vmem [shape: f32[16,64], index: 0, kind: input, shape index: {}]
  %s1 = inlined_call_operand.vmem [shape: f32[64,256], index: 1, kind: input, shape index: {}]
  %s2 = inlined_call_operand.vmem [shape: f32[1,64], index: 2, kind: input, shape index: {}]
  %s3 = inlined_call_operand.vmem [shape: f32[1,64], index: 3, kind: input, shape index: {}]
  %s4 = inlined_call_operand.vmem [shape: f32[1,256], index: 4, kind: input, shape index: {}]
  %s5 = inlined_call_operand.vmem [shape: f32[16,256], index: 5, kind: output, shape index: {}]
  %s6 = sld [smem:[#allocation0]]
  $region38: #{gpt_forward.19} parent=0
    _
  %s8 = ssub.s32 1, %s6
  %s9 = scalar_select 0, %s8, %s6
  // Predicated region
  $region2: #{gpt_forward.19} parent=0 // pred_check
    _
  $region3: #{gpt_forward.19} parent=0 // pred_check_branch
    %11 = sbr.rel (0) target = $region5
  $region4: #{gpt_forward.19} parent=0 // pred_region
    _
  $region5: #{gpt_forward.19} parent=0 // pred_fallthru
    _
  // Predicated region
  $region6: #{gpt_forward.19} parent=0 // pred_check
    _
  $region7: #{gpt_forward.19} parent=0 // pred_check_branch
    %13 = sbr.rel (0) target = $region9
  $region8: #{gpt_forward.19} parent=0 // pred_region
    _
  $region9: #{gpt_forward.19} parent=0 // pred_fallthru
    _
  // Predicated region
  $region10: #{gpt_forward.19} parent=0 // pred_check
    _
  $region11: #{gpt_forward.19} parent=0 // pred_check_branch
    %15 = sbr.rel (0) target = $region13
  $region12: #{gpt_forward.19} parent=0 // pred_region
    _
  $region13: #{gpt_forward.19} parent=0 // pred_fallthru
    _
  // Predicated region
  $region14: #{gpt_forward.19} parent=0 // pred_check
    _
  $region15: #{gpt_forward.19} parent=0 // pred_check_branch
    %17 = sbr.rel (0) target = $region17
  $region16: #{gpt_forward.19} parent=0 // pred_region
    _
  $region17: #{gpt_forward.19} parent=0 // pred_fallthru
    _
  // Predicated region
  $region18: #{gpt_forward.19} parent=0 // pred_check
    _
  $region19: #{gpt_forward.19} parent=0 // pred_check_branch
    %19 = sbr.rel (0) target = $region21
  $region20: #{gpt_forward.19} parent=0 // pred_region
    _
  $region21: #{gpt_forward.19} parent=0 // pred_fallthru
    _
  %p20 = scmp.eq.s32.totalorder 0, 0
  // Predicated region
  $region22: #{gpt_forward.19} parent=0 // pred_check
    %p21 = pneg %p20
  $region23: #{gpt_forward.19} parent=0 // pred_check_branch
    %23 = sbr.rel (%p21) target = $region25
  $region24: #{gpt_forward.19} parent=0 // pred_region
    %24 = vst [vmem:[#allocation2] sm:$0xff] 0.0
    %25 = vst [vmem:[#allocation2 + $0x8] sm:$0xff] 0.0
    %26 = vst [vmem:[#allocation2 + $0x10] sm:$0xff] 0.0
    %27 = vst [vmem:[#allocation2 + $0x18] sm:$0xff] 0.0
  $region25: #{gpt_forward.19} parent=0 // pred_fallthru
    _
  %v28 = vld [vmem:[%s0] sm:$0xff]
  %v29 = vld [vmem:[%s0 + $0x8] sm:$0xff]
  %vm30 = vcmask 523264
  %v31 = vsel %vm30, %v28, 0.0
  %32 = vadd.xlane.f32.xlu0 %v31
  %v33 = vpop.xlane.xlu0 %32
  %v34 = vsel %vm30, %v29, 0.0
  %35 = vadd.xlane.f32.xlu0 %v34
  %v36 = vpop.xlane.xlu0 %35
  %v37 = vmul.f32 %v33, 0.015625
  %v38 = vmul.f32 %v36, 0.015625
  %v39 = vsub.f32 %v28, %v37
  %v40 = vsub.f32 %v29, %v38
  %v41 = vmul.f32 %v39, %v39
  %v42 = vmul.f32 %v40, %v40
  %v43 = vsel %vm30, %v41, 0.0
  %44 = vadd.xlane.f32.xlu0 %v43
  %v45 = vpop.xlane.xlu0 %44
  %v46 = vsel %vm30, %v42, 0.0
  %47 = vadd.xlane.f32.xlu0 %v46
  %v48 = vpop.xlane.xlu0 %47
  %v49 = vmul.f32 %v45, 0.015625
  %v50 = vmul.f32 %v48, 0.015625
  %v51 = vadd.f32 %v49, 1e-05
  %v52 = vadd.f32 %v50, 1e-05
  %v53 = vrsqrt.pop %v51
  %v54 = vmul.f32 %v53, %v51
  %v55 = vmul.f32 %v54, %v53
  %v56 = vmul.f32 0.5, %v55
  %v57 = vsub.f32 1.5, %v56
  %v58 = vmul.f32 %v53, %v57
  %vm59 = vweird.f32 %v51
  %vm60 = vweird.f32 %v53
  %vm61 = vmor %vm59, %vm60
  %v62 = vsel %vm61, %v53, %v58
  %v63 = vrsqrt.pop %v52
  %v64 = vmul.f32 %v63, %v52
  %v65 = vmul.f32 %v64, %v63
  %v66 = vmul.f32 0.5, %v65
  %v67 = vsub.f32 1.5, %v66
  %v68 = vmul.f32 %v63, %v67
  %vm69 = vweird.f32 %v52
  %vm70 = vweird.f32 %v63
  %vm71 = vmor %vm69, %vm70
  %v72 = vsel %vm71, %v63, %v68
  %v73 = vmul.f32 %v39, %v62
  %v74 = vmul.f32 %v40, %v72
  %v75 = vld [vmem:[%s2] sm:$0x1]
  %v77 = vperm.slane %v75, 0
  %v79 = vmul.f32 %v77, %v73
  %v80 = vmul.f32 %v77, %v74
  %v81 = vld [vmem:[%s3] sm:$0x1]
  %v83 = vperm.slane %v81, 0
  %v85 = vadd.f32 %v79, %v83
  %v86 = vadd.f32 %v80, %v83
  %v87 = vld [vmem:[#allocation2] sm:$0xff]
  %v88 = vld [vmem:[#allocation2 + $0x8] sm:$0xff]
  %v89 = vld [vmem:[#allocation2 + $0x10] sm:$0xff]
  %v90 = vld [vmem:[#allocation2 + $0x18] sm:$0xff]
  %v91 = vld [vmem:[%s1] sm:$0xff]
  %v92 = vld [vmem:[%s1 + $0x8] sm:$0xff]
  %v93 = vld [vmem:[%s1 + $0x10] sm:$0xff]
  %v94 = vld [vmem:[%s1 + $0x18] sm:$0xff]
  %v95 = vld [vmem:[%s1 + $0x20] sm:$0xff]
  %v96 = vld [vmem:[%s1 + $0x28] sm:$0xff]
  %v97 = vld [vmem:[%s1 + $0x30] sm:$0xff]
  %v98 = vld [vmem:[%s1 + $0x38] sm:$0xff]
  %v99 = vld [vmem:[%s1 + $0x40] sm:$0xff]
  %v100 = vld [vmem:[%s1 + $0x48] sm:$0xff]
  %v101 = vld [vmem:[%s1 + $0x50] sm:$0xff]
  %v102 = vld [vmem:[%s1 + $0x58] sm:$0xff]
  %v103 = vld [vmem:[%s1 + $0x60] sm:$0xff]
  %v104 = vld [vmem:[%s1 + $0x68] sm:$0xff]
  %v105 = vld [vmem:[%s1 + $0x70] sm:$0xff]
  %v106 = vld [vmem:[%s1 + $0x78] sm:$0xff]
  %v108 = vsel %vm30, %v85, 0
  %v111 = vsel %vm30, %v86, 0
  %113 = vmatpush.msra.mxu0 0.0
  %114 = vmatpush.msra.mxu0 0.0
  %115 = vmatpush.msra.mxu0 0.0
  %116 = vmatpush.msra.mxu0 0.0
  %117 = vmatpush.msra.mxu0 0.0
  %118 = vmatpush.msra.mxu0 0.0
  %119 = vmatpush.msra.mxu0 0.0
  %120 = vmatpush.msra.mxu0 0.0
  %121 = vmatpush.msra.mxu0 %v105
  %122 = vmatpush.msra.mxu0 %v103
  %123 = vmatpush.msra.mxu0 %v101
  %124 = vmatpush.msra.mxu0 %v99
  %125 = vmatpush.msra.mxu0 %v97
  %126 = vmatpush.msra.mxu0 %v95
  %127 = vmatpush.msra.mxu0 %v93
  %128 = vmatpush.msra.mxu0 %v91
  %129 = vmatmul.f32.gmra.mxu0 %v108
  %v130 = vpop.f32.mrf.mxu0
  %v131 = vadd.f32 0.0, %v130
  %132 = vmatmul.f32.gmra.mxu0 %v111
  %v133 = vpop.f32.mrf.mxu0
  %v134 = vadd.f32 0.0, %v133
  %135 = vdwg.mxu0
  %136 = vmatpush.msra.mxu0 0.0
  %137 = vmatpush.msra.mxu0 0.0
  %138 = vmatpush.msra.mxu0 0.0
  %139 = vmatpush.msra.mxu0 0.0
  %140 = vmatpush.msra.mxu0 0.0
  %141 = vmatpush.msra.mxu0 0.0
  %142 = vmatpush.msra.mxu0 0.0
  %143 = vmatpush.msra.mxu0 0.0
  %144 = vmatpush.msra.mxu0 %v106
  %145 = vmatpush.msra.mxu0 %v104
  %146 = vmatpush.msra.mxu0 %v102
  %147 = vmatpush.msra.mxu0 %v100
  %148 = vmatpush.msra.mxu0 %v98
  %149 = vmatpush.msra.mxu0 %v96
  %150 = vmatpush.msra.mxu0 %v94
  %151 = vmatpush.msra.mxu0 %v92
  %152 = vmatmul.f32.gmra.mxu0 %v108
  %v153 = vpop.f32.mrf.mxu0
  %v154 = vadd.f32 0.0, %v153
  %155 = vmatmul.f32.gmra.mxu0 %v111
  %v156 = vpop.f32.mrf.mxu0
  %v157 = vadd.f32 0.0, %v156
  %158 = vdwg.mxu0
  %v159 = vadd.f32 %v87, %v131
  %v160 = vadd.f32 %v88, %v154
  %v161 = vadd.f32 %v89, %v134
  %v162 = vadd.f32 %v90, %v157
  %163 = vst [vmem:[#allocation2] sm:$0xff] %v159
  %164 = vst [vmem:[#allocation2 + $0x8] sm:$0xff] %v160
  %165 = vst [vmem:[#allocation2 + $0x10] sm:$0xff] %v161
  %166 = vst [vmem:[#allocation2 + $0x18] sm:$0xff] %v162
  // Predicated region
  $region26: #{gpt_forward.19} parent=0 // pred_check
    %p167 = pneg %p20
  $region27: #{gpt_forward.19} parent=0 // pred_check_branch
    %169 = sbr.rel (%p167) target = $region29
  $region28: #{gpt_forward.19} parent=0 // pred_region
    %v170 = vld [vmem:[#allocation2] sm:$0xff]
    %v171 = vld [vmem:[#allocation2 + $0x8] sm:$0xff]
    %v172 = vld [vmem:[#allocation2 + $0x10] sm:$0xff]
    %v173 = vld [vmem:[#allocation2 + $0x18] sm:$0xff]
    %v174 = vld [vmem:[%s4] sm:$0x3]
    %v176 = vperm.slane %v174, 0
    %v177 = vperm.slane %v174, 1
    %v180 = vadd.f32 %v170, %v176
    %v181 = vadd.f32 %v171, %v177
    %v182 = vadd.f32 %v172, %v176
    %v183 = vadd.f32 %v173, %v177
    %v184 = vmul.f32 %v180, 0.5
    %v185 = vmul.f32 %v181, 0.5
    %v186 = vmul.f32 %v182, 0.5
    %v187 = vmul.f32 %v183, 0.5
    %v188 = vmul.f32 %v180, 0.044715
    %v189 = vmul.f32 %v181, 0.044715
    %v190 = vmul.f32 %v182, 0.044715
    %v191 = vmul.f32 %v183, 0.044715
    %v192 = vmul.f32 %v188, %v180
    %v193 = vmul.f32 %v189, %v181
    %v194 = vmul.f32 %v190, %v182
    %v195 = vmul.f32 %v191, %v183
    %v196 = vmul.f32 %v192, %v180
    %v197 = vmul.f32 %v193, %v181
    %v198 = vmul.f32 %v194, %v182
    %v199 = vmul.f32 %v195, %v183
    %v200 = vadd.f32 %v180, %v196
    %v201 = vadd.f32 %v181, %v197
    %v202 = vadd.f32 %v182, %v198
    %v203 = vadd.f32 %v183, %v199
    %v204 = vmul.f32 %v200, 0.7978846
    %v205 = vmul.f32 %v201, 0.7978846
    %v206 = vmul.f32 %v202, 0.7978846
    %v207 = vmul.f32 %v203, 0.7978846
    %v208 = vtanh.pop %v204
    %v209 = vtanh.pop %v205
    %v210 = vtanh.pop %v206
    %v211 = vtanh.pop %v207
    %v212 = vadd.f32 %v208, 1.0
    %v213 = vadd.f32 %v209, 1.0
    %v214 = vadd.f32 %v210, 1.0
    %v215 = vadd.f32 %v211, 1.0
    %v216 = vmul.f32 %v184, %v212
    %v217 = vmul.f32 %v185, %v213
    %v218 = vmul.f32 %v186, %v214
    %v219 = vmul.f32 %v187, %v215
    %220 = vst [vmem:[%s5] sm:$0xff] %v216
    %221 = vst [vmem:[%s5 + $0x8] sm:$0xff] %v217
    %222 = vst [vmem:[%s5 + $0x10] sm:$0xff] %v218
    %223 = vst [vmem:[%s5 + $0x18] sm:$0xff] %v219
  $region29: #{gpt_forward.19} parent=0 // pred_fallthru
    _
  // Predicated region
  $region30: #{gpt_forward.19} parent=0 // pred_check
    _
  $region31: #{gpt_forward.19} parent=0 // pred_check_branch
    %225 = sbr.rel (0) target = $region33
  $region32: #{gpt_forward.19} parent=0 // pred_region
    _
  $region33: #{gpt_forward.19} parent=0 // pred_fallthru
    _
  // Predicated region
  $region34: #{gpt_forward.19} parent=0 // pred_check
    _
  $region35: #{gpt_forward.19} parent=0 // pred_check_branch
    %227 = sbr.rel (0) target = $region37
  $region36: #{gpt_forward.19} parent=0 // pred_region
    _
  $region37: #{gpt_forward.19} parent=0 // pred_fallthru
    _

</llo_original>
